<compile_context>
chip_gen: v6e
topology: v6e:2x2x1
jax: 0.10.0
libtpu: 0.0.40
codegen_flags: <defaults>
</compile_context>

<pallas_src>
import math

import jax
import jax.numpy as jnp
from jax.experimental import pallas as pl
from jax.experimental.pallas import tpu as pltpu

# ----- model hyper-parameters (consistent with the module) -----
GRAPH_EMB = 64          # fixed inside GraphNet.__init__
C_IN = 2                # Conv1d input channels (fixed by the module)
OUT_SIZE = 8
BATCH = 4
LENGTH = 16
LN_EPS = 1e-5

# Row indices inside the packed (8, GRAPH_EMB) vector-parameter slab.
_ROW_WC0, _ROW_WC1, _ROW_BC, _ROW_B1, _ROW_B2, _ROW_BO = 0, 1, 2, 3, 4, 5
VEC_ROWS = 8            # padded to a full sublane group


# ---------------------------------------------------------------------------
# Fused forward kernel (single grid point, everything VMEM-resident)
# ---------------------------------------------------------------------------
def graphnet_kernel(x_ref, w_ref, v_ref, o_ref):
    # x: (B, C_in, L).  Avg-pool commuted in front of the 1x1 conv:
    #   mean_L(conv1x1(x) + bc) == conv1x1(mean_L(x)) + bc
    xbar = jnp.mean(x_ref[...], axis=-1)                       # (B, C_in)

    # 1x1 conv on the pooled vector == two VPU broadcast FMAs
    # (keeps the degenerate K=2 contraction off the MXU).
    g = (xbar[:, 0:1] * v_ref[_ROW_WC0:_ROW_WC0 + 1, :]
         + xbar[:, 1:2] * v_ref[_ROW_WC1:_ROW_WC1 + 1, :]
         + v_ref[_ROW_BC:_ROW_BC + 1, :])                      # (B, E)

    # LayerNorm (affine folded into w1'/b1' at init).  Dropout == identity
    # in the eval/inference forward.
    mu = jnp.mean(g, axis=-1, keepdims=True)
    var = jnp.mean((g - mu) ** 2, axis=-1, keepdims=True)
    n = (g - mu) * jax.lax.rsqrt(var + LN_EPS)

    # Linear -> ReLU -> Linear -> ReLU -> Linear (wo padded to E columns).
    h = jax.lax.dot_general(n, w_ref[0], (((1,), (0,)), ((), ())),
                            preferred_element_type=jnp.float32)
    h = jnp.maximum(h + v_ref[_ROW_B1:_ROW_B1 + 1, :], 0.0)
    h = jax.lax.dot_general(h, w_ref[1], (((1,), (0,)), ((), ())),
                            preferred_element_type=jnp.float32)
    h = jnp.maximum(h + v_ref[_ROW_B2:_ROW_B2 + 1, :], 0.0)
    o = jax.lax.dot_general(h, w_ref[2], (((1,), (0,)), ((), ())),
                            preferred_element_type=jnp.float32)
    o_ref[...] = o + v_ref[_ROW_BO:_ROW_BO + 1, :]


# ---------------------------------------------------------------------------
# pallas_call plumbing
# ---------------------------------------------------------------------------
def _fs(shape):
    """Full-array BlockSpec for a grid of (1,)."""
    nd = len(shape)
    return pl.BlockSpec(shape, lambda i, nd=nd: (0,) * nd)


def graphnet_forward(x, params):
    """x: (B, C_in, L) float32 -> (B, OUT_SIZE) float32."""
    B = x.shape[0]
    out_pad = pl.pallas_call(
        graphnet_kernel,
        out_shape=jax.ShapeDtypeStruct((B, GRAPH_EMB), jnp.float32),
        grid=(1,),
        in_specs=[_fs(x.shape),
                  _fs(params['w_stack'].shape),
                  _fs(params['vec'].shape)],
        out_specs=_fs((B, GRAPH_EMB)),
        compiler_params=pltpu.CompilerParams(
            dimension_semantics=("arbitrary",)),
    )(x, params['w_stack'], params['vec'])
    # Padded output columns (zero weight/bias) are sliced off here (tiny XLA op).
    return out_pad[:, :OUT_SIZE]


# ---------------------------------------------------------------------------
# Deterministic parameter construction (PyTorch default inits).  Weights are
# stored pre-transposed to (in, out); the LN affine is folded into l1; all
# small tensors are packed into two arrays so the kernel does 3 DMAs total.
# ---------------------------------------------------------------------------
def _uniform(key, shape, bound):
    return jax.random.uniform(key, shape, jnp.float32, -bound, bound)


def init_params(key):
    ks = jax.random.split(key, 8)
    b_conv = 1.0 / math.sqrt(C_IN * 1)          # Conv1d fan_in = 2*1
    b_lin = 1.0 / math.sqrt(GRAPH_EMB)

    # Conv1d(2, 64, 1): weight (64, 2, 1) -> stored as (2, 64)
    wc = _uniform(ks[0], (C_IN, GRAPH_EMB), b_conv)
    bc = _uniform(ks[1], (GRAPH_EMB,), b_conv)
    # LayerNorm(64) default affine params
    lnw = jnp.ones((GRAPH_EMB,), jnp.float32)
    lnb = jnp.zeros((GRAPH_EMB,), jnp.float32)
    # Linear layers, stored as (in, out)
    w1 = _uniform(ks[2], (GRAPH_EMB, GRAPH_EMB), b_lin)
    b1 = _uniform(ks[3], (GRAPH_EMB,), b_lin)
    w2 = _uniform(ks[4], (GRAPH_EMB, GRAPH_EMB), b_lin)
    b2 = _uniform(ks[5], (GRAPH_EMB,), b_lin)
    wo = _uniform(ks[6], (GRAPH_EMB, OUT_SIZE), b_lin)
    bo = _uniform(ks[7], (OUT_SIZE,), b_lin)

    # Fold LayerNorm affine into the first Linear (exact up to FP reassoc).
    w1f = lnw[:, None] * w1
    b1f = lnb @ w1 + b1

    # Pad the output head to GRAPH_EMB columns (zeros sliced off in wrapper).
    wo_pad = jnp.zeros((GRAPH_EMB, GRAPH_EMB), jnp.float32).at[:, :OUT_SIZE].set(wo)
    bo_pad = jnp.zeros((GRAPH_EMB,), jnp.float32).at[:OUT_SIZE].set(bo)

    w_stack = jnp.stack([w1f, w2, wo_pad])              # (3, E, E)

    vec = jnp.zeros((VEC_ROWS, GRAPH_EMB), jnp.float32)
    vec = vec.at[_ROW_WC0].set(wc[0])
    vec = vec.at[_ROW_WC1].set(wc[1])
    vec = vec.at[_ROW_BC].set(bc)
    vec = vec.at[_ROW_B1].set(b1f)
    vec = vec.at[_ROW_B2].set(b2)
    vec = vec.at[_ROW_BO].set(bo_pad)

    return {'w_stack': w_stack, 'vec': vec}


if __name__ == "__main__":
    key = jax.random.PRNGKey(0)
    pkey, xkey = jax.random.split(key)
    params = init_params(pkey)
    x = jax.random.normal(xkey, (BATCH, C_IN, LENGTH), dtype=jnp.float32)

    out = jax.jit(graphnet_forward)(x, params)
    out = jax.block_until_ready(out)
    assert out.shape == (BATCH, OUT_SIZE), out.shape
    assert bool(jnp.all(jnp.isfinite(out)))
    print("KERNEL_OK")
</pallas_src>

<mosaic_0001>
module attributes {stable_mosaic.version = 11 : i64} {
  func.func @graphnet_kernel(%arg0: i32, %arg1: memref<4x2x16xf32, #tpu.memory_space<vmem>>, %arg2: memref<3x64x64xf32, #tpu.memory_space<vmem>>, %arg3: memref<8x64xf32, #tpu.memory_space<vmem>>, %arg4: memref<4x64xf32, #tpu.memory_space<vmem>>) attributes {dimension_semantics = [#tpu.dimension_semantics<arbitrary>], iteration_bounds = array<i64: 1>, scalar_prefetch = 0 : i64, scratch_operands = 0 : i64, tpu.core_type = #tpu.core_type<tc>, window_params = [{pipeline_mode = #tpu.pipeline_mode<synchronous>, transform_indices = @transform_0, window_bounds = array<i64: 4, 2, 16>}, {pipeline_mode = #tpu.pipeline_mode<synchronous>, transform_indices = @transform_1, window_bounds = array<i64: 3, 64, 64>}, {pipeline_mode = #tpu.pipeline_mode<synchronous>, transform_indices = @transform_2, window_bounds = array<i64: 8, 64>}, {pipeline_mode = #tpu.pipeline_mode<synchronous>, transform_indices = @transform_3, window_bounds = array<i64: 4, 64>}]} {
    %c0 = arith.constant 0 : index
    %c0_0 = arith.constant 0 : index
    %c0_1 = arith.constant 0 : index
    %0 = vector.load %arg1[%c0, %c0_0, %c0_1] : memref<4x2x16xf32, #tpu.memory_space<vmem>>, vector<4x2x16xf32>
    %cst = arith.constant dense<0.000000e+00> : vector<4x2xf32>
    %1 = vector.multi_reduction <add>, %0, %cst [2] : vector<4x2x16xf32> to vector<4x2xf32>
    %cst_2 = arith.constant 1.600000e+01 : f32
    %2 = vector.broadcast %cst_2 : f32 to vector<4x2xf32>
    %3 = arith.divf %1, %2 : vector<4x2xf32>
    %4 = vector.extract_strided_slice %3 {offsets = [0, 0], sizes = [4, 1], strides = [1, 1]} : vector<4x2xf32> to vector<4x1xf32>
    %c0_3 = arith.constant 0 : index
    %c0_4 = arith.constant 0 : index
    %5 = vector.load %arg3[%c0_3, %c0_4] : memref<8x64xf32, #tpu.memory_space<vmem>>, vector<1x64xf32>
    %6 = vector.broadcast %4 : vector<4x1xf32> to vector<4x64xf32>
    %7 = vector.broadcast %5 : vector<1x64xf32> to vector<4x64xf32>
    %8 = arith.mulf %6, %7 : vector<4x64xf32>
    %9 = vector.extract_strided_slice %3 {offsets = [0, 1], sizes = [4, 1], strides = [1, 1]} : vector<4x2xf32> to vector<4x1xf32>
    %c1 = arith.constant 1 : index
    %c0_5 = arith.constant 0 : index
    %10 = vector.load %arg3[%c1, %c0_5] : memref<8x64xf32, #tpu.memory_space<vmem>>, vector<1x64xf32>
    %11 = vector.broadcast %9 : vector<4x1xf32> to vector<4x64xf32>
    %12 = vector.broadcast %10 : vector<1x64xf32> to vector<4x64xf32>
    %13 = arith.mulf %11, %12 : vector<4x64xf32>
    %14 = arith.addf %8, %13 : vector<4x64xf32>
    %c2 = arith.constant 2 : index
    %c0_6 = arith.constant 0 : index
    %15 = vector.load %arg3[%c2, %c0_6] : memref<8x64xf32, #tpu.memory_space<vmem>>, vector<1x64xf32>
    %16 = vector.broadcast %15 : vector<1x64xf32> to vector<4x64xf32>
    %17 = arith.addf %14, %16 : vector<4x64xf32>
    %cst_7 = arith.constant dense<0.000000e+00> : vector<4xf32>
    %18 = vector.multi_reduction <add>, %17, %cst_7 [1] : vector<4x64xf32> to vector<4xf32>
    %19 = vector.shape_cast %18 : vector<4xf32> to vector<4x1xf32>
    %cst_8 = arith.constant 6.400000e+01 : f32
    %20 = vector.broadcast %cst_8 : f32 to vector<4x1xf32>
    %21 = arith.divf %19, %20 : vector<4x1xf32>
    %22 = vector.broadcast %21 : vector<4x1xf32> to vector<4x64xf32>
    %23 = arith.subf %17, %22 : vector<4x64xf32>
    %24 = arith.mulf %23, %23 : vector<4x64xf32>
    %cst_9 = arith.constant dense<0.000000e+00> : vector<4xf32>
    %25 = vector.multi_reduction <add>, %24, %cst_9 [1] : vector<4x64xf32> to vector<4xf32>
    %26 = vector.shape_cast %25 : vector<4xf32> to vector<4x1xf32>
    %cst_10 = arith.constant 6.400000e+01 : f32
    %27 = vector.broadcast %cst_10 : f32 to vector<4x1xf32>
    %28 = arith.divf %26, %27 : vector<4x1xf32>
    %29 = vector.broadcast %21 : vector<4x1xf32> to vector<4x64xf32>
    %30 = arith.subf %17, %29 : vector<4x64xf32>
    %cst_11 = arith.constant 9.99999974E-6 : f32
    %31 = vector.broadcast %cst_11 : f32 to vector<4x1xf32>
    %32 = arith.addf %28, %31 : vector<4x1xf32>
    %33 = math.rsqrt %32 : vector<4x1xf32>
    %34 = vector.broadcast %33 : vector<4x1xf32> to vector<4x64xf32>
    %35 = arith.mulf %30, %34 : vector<4x64xf32>
    %c0_12 = arith.constant 0 : index
    %c0_13 = arith.constant 0 : index
    %c0_14 = arith.constant 0 : index
    %36 = vector.load %arg2[%c0_12, %c0_13, %c0_14] : memref<3x64x64xf32, #tpu.memory_space<vmem>>, vector<1x64x64xf32>
    %37 = vector.shape_cast %36 : vector<1x64x64xf32> to vector<64x64xf32>
    %cst_15 = arith.constant dense<0.000000e+00> : vector<4x64xf32>
    %38 = tpu.matmul %35, %37, %cst_15 {dimension_numbers = #tpu.dot_dimension_numbers<[1], [0], [0], [1], [0, 0, 1, 1], [], []>} : vector<4x64xf32>, vector<64x64xf32>, vector<4x64xf32> -> vector<4x64xf32>
    %c3 = arith.constant 3 : index
    %c0_16 = arith.constant 0 : index
    %39 = vector.load %arg3[%c3, %c0_16] : memref<8x64xf32, #tpu.memory_space<vmem>>, vector<1x64xf32>
    %40 = vector.broadcast %39 : vector<1x64xf32> to vector<4x64xf32>
    %41 = arith.addf %38, %40 : vector<4x64xf32>
    %cst_17 = arith.constant 0.000000e+00 : f32
    %42 = vector.broadcast %cst_17 : f32 to vector<4x64xf32>
    %43 = arith.maximumf %41, %42 : vector<4x64xf32>
    %c1_18 = arith.constant 1 : index
    %c0_19 = arith.constant 0 : index
    %c0_20 = arith.constant 0 : index
    %44 = vector.load %arg2[%c1_18, %c0_19, %c0_20] : memref<3x64x64xf32, #tpu.memory_space<vmem>>, vector<1x64x64xf32>
    %45 = vector.shape_cast %44 : vector<1x64x64xf32> to vector<64x64xf32>
    %cst_21 = arith.constant dense<0.000000e+00> : vector<4x64xf32>
    %46 = tpu.matmul %43, %45, %cst_21 {dimension_numbers = #tpu.dot_dimension_numbers<[1], [0], [0], [1], [0, 0, 1, 1], [], []>} : vector<4x64xf32>, vector<64x64xf32>, vector<4x64xf32> -> vector<4x64xf32>
    %c4 = arith.constant 4 : index
    %c0_22 = arith.constant 0 : index
    %47 = vector.load %arg3[%c4, %c0_22] : memref<8x64xf32, #tpu.memory_space<vmem>>, vector<1x64xf32>
    %48 = vector.broadcast %47 : vector<1x64xf32> to vector<4x64xf32>
    %49 = arith.addf %46, %48 : vector<4x64xf32>
    %cst_23 = arith.constant 0.000000e+00 : f32
    %50 = vector.broadcast %cst_23 : f32 to vector<4x64xf32>
    %51 = arith.maximumf %49, %50 : vector<4x64xf32>
    %c2_24 = arith.constant 2 : index
    %c0_25 = arith.constant 0 : index
    %c0_26 = arith.constant 0 : index
    %52 = vector.load %arg2[%c2_24, %c0_25, %c0_26] : memref<3x64x64xf32, #tpu.memory_space<vmem>>, vector<1x64x64xf32>
    %53 = vector.shape_cast %52 : vector<1x64x64xf32> to vector<64x64xf32>
    %cst_27 = arith.constant dense<0.000000e+00> : vector<4x64xf32>
    %54 = tpu.matmul %51, %53, %cst_27 {dimension_numbers = #tpu.dot_dimension_numbers<[1], [0], [0], [1], [0, 0, 1, 1], [], []>} : vector<4x64xf32>, vector<64x64xf32>, vector<4x64xf32> -> vector<4x64xf32>
    %c5 = arith.constant 5 : index
    %c0_28 = arith.constant 0 : index
    %55 = vector.load %arg3[%c5, %c0_28] : memref<8x64xf32, #tpu.memory_space<vmem>>, vector<1x64xf32>
    %56 = vector.broadcast %55 : vector<1x64xf32> to vector<4x64xf32>
    %57 = arith.addf %54, %56 : vector<4x64xf32>
    %c0_29 = arith.constant 0 : index
    %c0_30 = arith.constant 0 : index
    %58 = vector.load %arg4[%c0_29, %c0_30] : memref<4x64xf32, #tpu.memory_space<vmem>>, vector<4x64xf32>
    tpu.vector_store %arg4[%c0_29, %c0_30], %57 {strides = array<i32>} : memref<4x64xf32, #tpu.memory_space<vmem>>, vector<4x64xf32>,
    return
  }
  func.func @transform_0(%arg0: i32) -> (i32, i32, i32) {
    %c0_i32 = arith.constant 0 : i32
    %c0_i32_0 = arith.constant 0 : i32
    %c0_i32_1 = arith.constant 0 : i32
    %c0_i32_2 = arith.constant 0 : i32
    return %c0_i32, %c0_i32_0, %c0_i32_1 : i32, i32, i32
  }
  func.func @transform_1(%arg0: i32) -> (i32, i32, i32) {
    %c0_i32 = arith.constant 0 : i32
    %c0_i32_0 = arith.constant 0 : i32
    %c0_i32_1 = arith.constant 0 : i32
    %c0_i32_2 = arith.constant 0 : i32
    return %c0_i32, %c0_i32_0, %c0_i32_1 : i32, i32, i32
  }
  func.func @transform_2(%arg0: i32) -> (i32, i32) {
    %c0_i32 = arith.constant 0 : i32
    %c0_i32_0 = arith.constant 0 : i32
    %c0_i32_1 = arith.constant 0 : i32
    return %c0_i32, %c0_i32_0 : i32, i32
  }
  func.func @transform_3(%arg0: i32) -> (i32, i32) {
    %c0_i32 = arith.constant 0 : i32
    %c0_i32_0 = arith.constant 0 : i32
    %c0_i32_1 = arith.constant 0 : i32
    return %c0_i32, %c0_i32_0 : i32, i32
  }
}

</mosaic_0001>

<llo_original>
// kernel: graphnet_forward.1
$region0: #{graphnet_forward.1}
  #allocation0 [shape = 'u32[]', space=smem, size = 0x4, offset = 0x4, fixed_abs, tag = 'smem constant byte address 0x4 - core index']
  #allocation1 [shape = 'u32[144,128]{1,0:T(1,128)}', space=vmem, size = 0x12000, scoped, tag = 'internal scratch']
  %s0 = inlined_call_operand.hbm [shape: f32[4,2,16], index: 0, kind: input, shape index: {}]
  %s1 = inlined_call_operand.hbm [shape: f32[3,64,64], index: 1, kind: input, shape index: {}]
  %s2 = inlined_call_operand.hbm [shape: f32[8,64], index: 2, kind: input, shape index: {}]
  %s3 = inlined_call_operand.hbm [shape: f32[4,64], index: 3, kind: output, shape index: {}]
  %s4 = sld [smem:[#allocation0]]
  $region34: #{graphnet_forward.1} parent=0
    _
  %s6 = ssub.s32 1, %s4
  %s7 = scalar_select 0, %s6, %s4
  $region1: #{graphnet_forward.1} parent=0
    #allocation2 [shape = 'u8[4096]{0}', space=vmem, size = 0x1000, scoped, tag = 'input window, operand 0, single buffered']
    #allocation3 [shape = 's32[1]{0}', space=sflag, size = 0x4, scoped, tag = 'scoped memory for graphnet_forward.1']
    #allocation4 [shape = 's32[1]{0}', space=sflag, size = 0x4, scoped, tag = 'scoped memory for graphnet_forward.1']
    #allocation5 [shape = 'u8[98304]{0}', space=vmem, size = 0x18000, scoped, tag = 'input window, operand 1, single buffered']
    #allocation6 [shape = 's32[1]{0}', space=sflag, size = 0x4, scoped, tag = 'scoped memory for graphnet_forward.1']
    #allocation7 [shape = 'u8[4096]{0}', space=vmem, size = 0x1000, scoped, tag = 'input window, operand 2, single buffered']
    #allocation8 [shape = 'u8[2048]{0}', space=vmem, size = 0x800, scoped, tag = 'output window, operand 0, single buffered']
    %8 = vsyncpa [#allocation3], 0
    %9 = vsyncpa [#allocation6], 0
    %10 = vsyncpa [#allocation4], 0
    // Predicated region
    $region2: #{graphnet_forward.1} parent=1 // pred_check
      _
    $region3: #{graphnet_forward.1} parent=1 // pred_check_branch
      %12 = sbr.rel (0) target = $region5
    $region4: #{graphnet_forward.1} parent=1 // pred_region
      %s14 = ssub.s32 128, 128
      %15 = vsyncadd [#allocation3], %s14
      %s16 = sshll.u32 [#allocation2], 4
      %s17 = int_to_ptr.vmem [resolvable:$true] %s16
      %22 = dma.hbm_to_vmem [thread:$0]  %s0, 128, %s17, [#allocation3], 32, 32, 2
    $region5: #{graphnet_forward.1} parent=1 // pred_fallthru
      _
    // Predicated region
    $region6: #{graphnet_forward.1} parent=1 // pred_check
      _
    $region7: #{graphnet_forward.1} parent=1 // pred_check_branch
      %24 = sbr.rel (0) target = $region9
    $region8: #{graphnet_forward.1} parent=1 // pred_region
      %s26 = ssub.s32 3072, 3072
      %27 = vsyncadd [#allocation6], %s26
      %s28 = sshll.u32 [#allocation5], 4
      %s29 = int_to_ptr.vmem [resolvable:$true] %s28
      %34 = dma.hbm_to_vmem [thread:$0]  %s1, 3072, %s29, [#allocation6], 128, 128, 8
    $region9: #{graphnet_forward.1} parent=1 // pred_fallthru
      _
    // Predicated region
    $region10: #{graphnet_forward.1} parent=1 // pred_check
      _
    $region11: #{graphnet_forward.1} parent=1 // pred_check_branch
      %36 = sbr.rel (0) target = $region13
    $region12: #{graphnet_forward.1} parent=1 // pred_region
      %s38 = ssub.s32 128, 128
      %39 = vsyncadd [#allocation6], %s38
      %s41 = sshll.u32 [#allocation7], 4
      %s42 = int_to_ptr.vmem [resolvable:$true] %s41
      %44 = dma.hbm_to_vmem [thread:$0]  %s2, 128, %s42, [#allocation6]
    $region13: #{graphnet_forward.1} parent=1 // pred_fallthru
      _
    // Predicated region
    $region14: #{graphnet_forward.1} parent=1 // pred_check
      _
    $region15: #{graphnet_forward.1} parent=1 // pred_check_branch
      %46 = sbr.rel (0) target = $region17
    $region16: #{graphnet_forward.1} parent=1 // pred_region
      %47 = dma.done [#allocation3], 128
    $region17: #{graphnet_forward.1} parent=1 // pred_fallthru
      _
    // Predicated region
    $region18: #{graphnet_forward.1} parent=1 // pred_check
      _
    $region19: #{graphnet_forward.1} parent=1 // pred_check_branch
      %49 = sbr.rel (0) target = $region21
    $region20: #{graphnet_forward.1} parent=1 // pred_region
      %50 = dma.done [#allocation6], 3072
    $region21: #{graphnet_forward.1} parent=1 // pred_fallthru
      _
    // Predicated region
    $region22: #{graphnet_forward.1} parent=1 // pred_check
      _
    $region23: #{graphnet_forward.1} parent=1 // pred_check_branch
      %52 = sbr.rel (0) target = $region25
    $region24: #{graphnet_forward.1} parent=1 // pred_region
      %53 = dma.done [#allocation6], 128
    $region25: #{graphnet_forward.1} parent=1 // pred_fallthru
      _
    %v54 = vld [vmem:[#allocation2] sm:$0x3]
    %v55 = vld [vmem:[#allocation2 + $0x2] sm:$0x3]
    %v56 = vld [vmem:[#allocation2 + $0x4] sm:$0x3]
    %v57 = vld [vmem:[#allocation2 + $0x6] sm:$0x3]
    %vm58 = vcmask 123904
    %v59 = vsel %vm58, %v54, 0.0
    %60 = vadd.xlane.f32.xlu0 %v59
    %v61 = vpop.xlane.xlu0 %60
    %v62 = vsel %vm58, %v55, 0.0
    %63 = vadd.xlane.f32.xlu0 %v62
    %v64 = vpop.xlane.xlu0 %63
    %v65 = vsel %vm58, %v56, 0.0
    %66 = vadd.xlane.f32.xlu0 %v65
    %v67 = vpop.xlane.xlu0 %66
    %v68 = vsel %vm58, %v57, 0.0
    %69 = vadd.xlane.f32.xlu0 %v68
    %v70 = vpop.xlane.xlu0 %69
    %v71 = vrcp.pop 16.0
    %v72 = vmul.f32 %v61, %v71
    %v73 = vmul.f32 %v64, %v71
    %v74 = vmul.f32 %v67, %v71
    %v75 = vmul.f32 %v70, %v71
    %v76 = vld [vmem:[#allocation7] sm:$0x1]
    %v77 = vlaneseq
    %v78 = vshrl.u32 %v77, 7
    %v79 = vsub.s32 0, %v78
    %v80 = vrot.slane %v72, %v79
    %v81 = vlaneseq
    %v82 = vshrl.u32 %v81, 7
    %v83 = vsub.s32 0, %v82
    %v84 = vrot.slane %v73, %v83
    %v85 = vlaneseq
    %v86 = vshrl.u32 %v85, 7
    %v87 = vsub.s32 0, %v86
    %v88 = vrot.slane %v74, %v87
    %v89 = vlaneseq
    %v90 = vshrl.u32 %v89, 7
    %v91 = vsub.s32 0, %v90
    %v92 = vrot.slane %v75, %v91
    %v93 = vlaneseq
    %v94 = vshrl.u32 %v93, 7
    %v95 = vsub.s32 0, %v94
    %v96 = vrot.slane %v76, %v95
    %99 = vbcast.lane.b32.xlu0 %v96, 256
    %v100 = vpop.permute.xlu0 %99
    %s102 = sor.u32 256, 8
    %103 = vbcast.lane.b32.xlu0 %v96, %s102
    %v104 = vpop.permute.xlu0 %103
    %s106 = sor.u32 256, 16
    %107 = vbcast.lane.b32.xlu0 %v96, %s106
    %v108 = vpop.permute.xlu0 %107
    %s110 = sor.u32 256, 24
    %111 = vbcast.lane.b32.xlu0 %v96, %s110
    %v112 = vpop.permute.xlu0 %111
    %s114 = sor.u32 256, 32
    %115 = vbcast.lane.b32.xlu0 %v96, %s114
    %v116 = vpop.permute.xlu0 %115
    %s118 = sor.u32 256, 40
    %119 = vbcast.lane.b32.xlu0 %v96, %s118
    %v120 = vpop.permute.xlu0 %119
    %s122 = sor.u32 256, 48
    %123 = vbcast.lane.b32.xlu0 %v96, %s122
    %v124 = vpop.permute.xlu0 %123
    %s126 = sor.u32 256, 56
    %127 = vbcast.lane.b32.xlu0 %v96, %s126
    %v128 = vpop.permute.xlu0 %127
    %v137 = vmul.f32 %v80, %v100
    %v138 = vmul.f32 %v80, %v104
    %v139 = vmul.f32 %v80, %v108
    %v140 = vmul.f32 %v80, %v112
    %v141 = vmul.f32 %v80, %v116
    %v142 = vmul.f32 %v80, %v120
    %v143 = vmul.f32 %v80, %v124
    %v144 = vmul.f32 %v80, %v128
    %v145 = vmul.f32 %v84, %v100
    %v146 = vmul.f32 %v84, %v104
    %v147 = vmul.f32 %v84, %v108
    %v148 = vmul.f32 %v84, %v112
    %v149 = vmul.f32 %v84, %v116
    %v150 = vmul.f32 %v84, %v120
    %v151 = vmul.f32 %v84, %v124
    %v152 = vmul.f32 %v84, %v128
    %v153 = vmul.f32 %v88, %v100
    %v154 = vmul.f32 %v88, %v104
    %v155 = vmul.f32 %v88, %v108
    %v156 = vmul.f32 %v88, %v112
    %v157 = vmul.f32 %v88, %v116
    %v158 = vmul.f32 %v88, %v120
    %v159 = vmul.f32 %v88, %v124
    %v160 = vmul.f32 %v88, %v128
    %v161 = vmul.f32 %v92, %v100
    %v162 = vmul.f32 %v92, %v104
    %v163 = vmul.f32 %v92, %v108
    %v164 = vmul.f32 %v92, %v112
    %v165 = vmul.f32 %v92, %v116
    %v166 = vmul.f32 %v92, %v120
    %v167 = vmul.f32 %v92, %v124
    %v168 = vmul.f32 %v92, %v128
    %v169 = vld [vmem:[#allocation7 + $0x1] sm:$0x1]
    %v170 = vlaneseq
    %v171 = vshrl.u32 %v170, 7
    %v172 = vsub.s32 1, %v171
    %v173 = vrot.slane %v72, %v172
    %v174 = vlaneseq
    %v175 = vshrl.u32 %v174, 7
    %v176 = vsub.s32 1, %v175
    %v177 = vrot.slane %v73, %v176
    %v178 = vlaneseq
    %v179 = vshrl.u32 %v178, 7
    %v180 = vsub.s32 1, %v179
    %v181 = vrot.slane %v74, %v180
    %v182 = vlaneseq
    %v183 = vshrl.u32 %v182, 7
    %v184 = vsub.s32 1, %v183
    %v185 = vrot.slane %v75, %v184
    %v186 = vlaneseq
    %v187 = vshrl.u32 %v186, 7
    %v188 = vsub.s32 0, %v187
    %v189 = vrot.slane %v169, %v188
    %192 = vbcast.lane.b32.xlu0 %v189, 256
    %v193 = vpop.permute.xlu0 %192
    %s195 = sor.u32 256, 8
    %196 = vbcast.lane.b32.xlu0 %v189, %s195
    %v197 = vpop.permute.xlu0 %196
    %s199 = sor.u32 256, 16
    %200 = vbcast.lane.b32.xlu0 %v189, %s199
    %v201 = vpop.permute.xlu0 %200
    %s203 = sor.u32 256, 24
    %204 = vbcast.lane.b32.xlu0 %v189, %s203
    %v205 = vpop.permute.xlu0 %204
    %s207 = sor.u32 256, 32
    %208 = vbcast.lane.b32.xlu0 %v189, %s207
    %v209 = vpop.permute.xlu0 %208
    %s211 = sor.u32 256, 40
    %212 = vbcast.lane.b32.xlu0 %v189, %s211
    %v213 = vpop.permute.xlu0 %212
    %s215 = sor.u32 256, 48
    %216 = vbcast.lane.b32.xlu0 %v189, %s215
    %v217 = vpop.permute.xlu0 %216
    %s219 = sor.u32 256, 56
    %220 = vbcast.lane.b32.xlu0 %v189, %s219
    %v221 = vpop.permute.xlu0 %220
    %v230 = vmul.f32 %v173, %v193
    %v231 = vmul.f32 %v173, %v197
    %v232 = vmul.f32 %v173, %v201
    %v233 = vmul.f32 %v173, %v205
    %v234 = vmul.f32 %v173, %v209
    %v235 = vmul.f32 %v173, %v213
    %v236 = vmul.f32 %v173, %v217
    %v237 = vmul.f32 %v173, %v221
    %v238 = vmul.f32 %v177, %v193
    %v239 = vmul.f32 %v177, %v197
    %v240 = vmul.f32 %v177, %v201
    %v241 = vmul.f32 %v177, %v205
    %v242 = vmul.f32 %v177, %v209
    %v243 = vmul.f32 %v177, %v213
    %v244 = vmul.f32 %v177, %v217
    %v245 = vmul.f32 %v177, %v221
    %v246 = vmul.f32 %v181, %v193
    %v247 = vmul.f32 %v181, %v197
    %v248 = vmul.f32 %v181, %v201
    %v249 = vmul.f32 %v181, %v205
    %v250 = vmul.f32 %v181, %v209
    %v251 = vmul.f32 %v181, %v213
    %v252 = vmul.f32 %v181, %v217
    %v253 = vmul.f32 %v181, %v221
    %v254 = vmul.f32 %v185, %v193
    %v255 = vmul.f32 %v185, %v197
    %v256 = vmul.f32 %v185, %v201
    %v257 = vmul.f32 %v185, %v205
    %v258 = vmul.f32 %v185, %v209
    %v259 = vmul.f32 %v185, %v213
    %v260 = vmul.f32 %v185, %v217
    %v261 = vmul.f32 %v185, %v221
    %v262 = vadd.f32 %v137, %v230
    %v263 = vadd.f32 %v138, %v231
    %v264 = vadd.f32 %v139, %v232
    %v265 = vadd.f32 %v140, %v233
    %v266 = vadd.f32 %v141, %v234
    %v267 = vadd.f32 %v142, %v235
    %v268 = vadd.f32 %v143, %v236
    %v269 = vadd.f32 %v144, %v237
    %v270 = vadd.f32 %v145, %v238
    %v271 = vadd.f32 %v146, %v239
    %v272 = vadd.f32 %v147, %v240
    %v273 = vadd.f32 %v148, %v241
    %v274 = vadd.f32 %v149, %v242
    %v275 = vadd.f32 %v150, %v243
    %v276 = vadd.f32 %v151, %v244
    %v277 = vadd.f32 %v152, %v245
    %v278 = vadd.f32 %v153, %v246
    %v279 = vadd.f32 %v154, %v247
    %v280 = vadd.f32 %v155, %v248
    %v281 = vadd.f32 %v156, %v249
    %v282 = vadd.f32 %v157, %v250
    %v283 = vadd.f32 %v158, %v251
    %v284 = vadd.f32 %v159, %v252
    %v285 = vadd.f32 %v160, %v253
    %v286 = vadd.f32 %v161, %v254
    %v287 = vadd.f32 %v162, %v255
    %v288 = vadd.f32 %v163, %v256
    %v289 = vadd.f32 %v164, %v257
    %v290 = vadd.f32 %v165, %v258
    %v291 = vadd.f32 %v166, %v259
    %v292 = vadd.f32 %v167, %v260
    %v293 = vadd.f32 %v168, %v261
    %v294 = vld [vmem:[#allocation7 + $0x2] sm:$0x1]
    %v295 = vlaneseq
    %v296 = vshrl.u32 %v295, 7
    %v297 = vsub.s32 0, %v296
    %v298 = vrot.slane %v294, %v297
    %301 = vbcast.lane.b32.xlu0 %v298, 256
    %v302 = vpop.permute.xlu0 %301
    %s304 = sor.u32 256, 8
    %305 = vbcast.lane.b32.xlu0 %v298, %s304
    %v306 = vpop.permute.xlu0 %305
    %s308 = sor.u32 256, 16
    %309 = vbcast.lane.b32.xlu0 %v298, %s308
    %v310 = vpop.permute.xlu0 %309
    %s312 = sor.u32 256, 24
    %313 = vbcast.lane.b32.xlu0 %v298, %s312
    %v314 = vpop.permute.xlu0 %313
    %s316 = sor.u32 256, 32
    %317 = vbcast.lane.b32.xlu0 %v298, %s316
    %v318 = vpop.permute.xlu0 %317
    %s320 = sor.u32 256, 40
    %321 = vbcast.lane.b32.xlu0 %v298, %s320
    %v322 = vpop.permute.xlu0 %321
    %s324 = sor.u32 256, 48
    %325 = vbcast.lane.b32.xlu0 %v298, %s324
    %v326 = vpop.permute.xlu0 %325
    %s328 = sor.u32 256, 56
    %329 = vbcast.lane.b32.xlu0 %v298, %s328
    %v330 = vpop.permute.xlu0 %329
    %v339 = vadd.f32 %v262, %v302
    %v340 = vadd.f32 %v263, %v306
    %v341 = vadd.f32 %v264, %v310
    %v342 = vadd.f32 %v265, %v314
    %v343 = vadd.f32 %v266, %v318
    %v344 = vadd.f32 %v267, %v322
    %v345 = vadd.f32 %v268, %v326
    %v346 = vadd.f32 %v269, %v330
    %v347 = vadd.f32 %v270, %v302
    %v348 = vadd.f32 %v271, %v306
    %v349 = vadd.f32 %v272, %v310
    %v350 = vadd.f32 %v273, %v314
    %v351 = vadd.f32 %v274, %v318
    %v352 = vadd.f32 %v275, %v322
    %v353 = vadd.f32 %v276, %v326
    %v354 = vadd.f32 %v277, %v330
    %v355 = vadd.f32 %v278, %v302
    %v356 = vadd.f32 %v279, %v306
    %v357 = vadd.f32 %v280, %v310
    %v358 = vadd.f32 %v281, %v314
    %v359 = vadd.f32 %v282, %v318
    %v360 = vadd.f32 %v283, %v322
    %v361 = vadd.f32 %v284, %v326
    %v362 = vadd.f32 %v285, %v330
    %v363 = vadd.f32 %v286, %v302
    %v364 = vadd.f32 %v287, %v306
    %v365 = vadd.f32 %v288, %v310
    %v366 = vadd.f32 %v289, %v314
    %v367 = vadd.f32 %v290, %v318
    %v368 = vadd.f32 %v291, %v322
    %v369 = vadd.f32 %v292, %v326
    %v370 = vadd.f32 %v293, %v330
    %403 = vset.pattern.permute.xlu0 0
    %404 = vperm.xlu0 %403, %v339
    %v405 = vpop.permute.xlu0 %404
    %406 = vset.pattern.permute.xlu0 0
    %407 = vperm.xlu0 %406, %v340
    %v408 = vpop.permute.xlu0 %407
    %409 = vset.pattern.permute.xlu0 0
    %410 = vperm.xlu0 %409, %v341
    %v411 = vpop.permute.xlu0 %410
    %412 = vset.pattern.permute.xlu0 0
    %413 = vperm.xlu0 %412, %v342
    %v414 = vpop.permute.xlu0 %413
    %415 = vset.pattern.permute.xlu0 0
    %416 = vperm.xlu0 %415, %v343
    %v417 = vpop.permute.xlu0 %416
    %418 = vset.pattern.permute.xlu0 0
    %419 = vperm.xlu0 %418, %v344
    %v420 = vpop.permute.xlu0 %419
    %421 = vset.pattern.permute.xlu0 0
    %422 = vperm.xlu0 %421, %v345
    %v423 = vpop.permute.xlu0 %422
    %424 = vset.pattern.permute.xlu0 0
    %425 = vperm.xlu0 %424, %v346
    %v426 = vpop.permute.xlu0 %425
    %427 = vset.pattern.permute.xlu0 0
    %428 = vperm.xlu0 %427, %v347
    %v429 = vpop.permute.xlu0 %428
    %430 = vset.pattern.permute.xlu0 0
    %431 = vperm.xlu0 %430, %v348
    %v432 = vpop.permute.xlu0 %431
    %433 = vset.pattern.permute.xlu0 0
    %434 = vperm.xlu0 %433, %v349
    %v435 = vpop.permute.xlu0 %434
    %436 = vset.pattern.permute.xlu0 0
    %437 = vperm.xlu0 %436, %v350
    %v438 = vpop.permute.xlu0 %437
    %439 = vset.pattern.permute.xlu0 0
    %440 = vperm.xlu0 %439, %v351
    %v441 = vpop.permute.xlu0 %440
    %442 = vset.pattern.permute.xlu0 0
    %443 = vperm.xlu0 %442, %v352
    %v444 = vpop.permute.xlu0 %443
    %445 = vset.pattern.permute.xlu0 0
    %446 = vperm.xlu0 %445, %v353
    %v447 = vpop.permute.xlu0 %446
    %448 = vset.pattern.permute.xlu0 0
    %449 = vperm.xlu0 %448, %v354
    %v450 = vpop.permute.xlu0 %449
    %451 = vset.pattern.permute.xlu0 0
    %452 = vperm.xlu0 %451, %v355
    %v453 = vpop.permute.xlu0 %452
    %454 = vset.pattern.permute.xlu0 0
    %455 = vperm.xlu0 %454, %v356
    %v456 = vpop.permute.xlu0 %455
    %457 = vset.pattern.permute.xlu0 0
    %458 = vperm.xlu0 %457, %v357
    %v459 = vpop.permute.xlu0 %458
    %460 = vset.pattern.permute.xlu0 0
    %461 = vperm.xlu0 %460, %v358
    %v462 = vpop.permute.xlu0 %461
    %463 = vset.pattern.permute.xlu0 0
    %464 = vperm.xlu0 %463, %v359
    %v465 = vpop.permute.xlu0 %464
    %466 = vset.pattern.permute.xlu0 0
    %467 = vperm.xlu0 %466, %v360
    %v468 = vpop.permute.xlu0 %467
    %469 = vset.pattern.permute.xlu0 0
    %470 = vperm.xlu0 %469, %v361
    %v471 = vpop.permute.xlu0 %470
    %472 = vset.pattern.permute.xlu0 0
    %473 = vperm.xlu0 %472, %v362
    %v474 = vpop.permute.xlu0 %473
    %475 = vset.pattern.permute.xlu0 0
    %476 = vperm.xlu0 %475, %v363
    %v477 = vpop.permute.xlu0 %476
    %478 = vset.pattern.permute.xlu0 0
    %479 = vperm.xlu0 %478, %v364
    %v480 = vpop.permute.xlu0 %479
    %481 = vset.pattern.permute.xlu0 0
    %482 = vperm.xlu0 %481, %v365
    %v483 = vpop.permute.xlu0 %482
    %484 = vset.pattern.permute.xlu0 0
    %485 = vperm.xlu0 %484, %v366
    %v486 = vpop.permute.xlu0 %485
    %487 = vset.pattern.permute.xlu0 0
    %488 = vperm.xlu0 %487, %v367
    %v489 = vpop.permute.xlu0 %488
    %490 = vset.pattern.permute.xlu0 0
    %491 = vperm.xlu0 %490, %v368
    %v492 = vpop.permute.xlu0 %491
    %493 = vset.pattern.permute.xlu0 0
    %494 = vperm.xlu0 %493, %v369
    %v495 = vpop.permute.xlu0 %494
    %496 = vset.pattern.permute.xlu0 0
    %497 = vperm.xlu0 %496, %v370
    %v498 = vpop.permute.xlu0 %497
    %v499 = vlaneseq
    %v500 = vand.u32 %v499, 127
    %v501 = vlaneseq
    %v502 = vshrl.u32 %v501, 7
    %v503 = vsub.s32 %v500, %v502
    %v504 = vrot.slane %v405, %v503
    %v505 = vadd.s32 %v500, 4294967288
    %v506 = vlaneseq
    %v507 = vshrl.u32 %v506, 7
    %v508 = vsub.s32 %v505, %v507
    %v509 = vrot.slane %v408, %v508
    %vm510 = vcmask 130112
    %v511 = vsel %vm510, %v509, %v504
    %v512 = vadd.s32 %v500, 4294967280
    %v513 = vlaneseq
    %v514 = vshrl.u32 %v513, 7
    %v515 = vsub.s32 %v512, %v514
    %v516 = vrot.slane %v411, %v515
    %vm517 = vcmask 195712
    %v518 = vsel %vm517, %v516, %v511
    %v519 = vadd.s32 %v500, 4294967272
    %v520 = vlaneseq
    %v521 = vshrl.u32 %v520, 7
    %v522 = vsub.s32 %v519, %v521
    %v523 = vrot.slane %v414, %v522
    %vm524 = vcmask 261312
    %v525 = vsel %vm524, %v523, %v518
    %v526 = vadd.s32 %v500, 4294967264
    %v527 = vlaneseq
    %v528 = vshrl.u32 %v527, 7
    %v529 = vsub.s32 %v526, %v528
    %v530 = vrot.slane %v417, %v529
    %vm531 = vcmask 326912
    %v532 = vsel %vm531, %v530, %v525
    %v533 = vadd.s32 %v500, 4294967256
    %v534 = vlaneseq
    %v535 = vshrl.u32 %v534, 7
    %v536 = vsub.s32 %v533, %v535
    %v537 = vrot.slane %v420, %v536
    %vm538 = vcmask 392512
    %v539 = vsel %vm538, %v537, %v532
    %v540 = vadd.s32 %v500, 4294967248
    %v541 = vlaneseq
    %v542 = vshrl.u32 %v541, 7
    %v543 = vsub.s32 %v540, %v542
    %v544 = vrot.slane %v423, %v543
    %vm545 = vcmask 458112
    %v546 = vsel %vm545, %v544, %v539
    %v547 = vadd.s32 %v500, 4294967240
    %v548 = vlaneseq
    %v549 = vshrl.u32 %v548, 7
    %v550 = vsub.s32 %v547, %v549
    %v551 = vrot.slane %v426, %v550
    %vm552 = vcmask 523712
    %v553 = vsel %vm552, %v551, %v546
    %v554 = vlaneseq
    %v555 = vshrl.u32 %v554, 7
    %v556 = vsub.s32 %v500, %v555
    %v557 = vrot.slane %v429, %v556
    %v558 = vlaneseq
    %v559 = vshrl.u32 %v558, 7
    %v560 = vsub.s32 %v505, %v559
    %v561 = vrot.slane %v432, %v560
    %v562 = vsel %vm510, %v561, %v557
    %v563 = vlaneseq
    %v564 = vshrl.u32 %v563, 7
    %v565 = vsub.s32 %v512, %v564
    %v566 = vrot.slane %v435, %v565
    %v567 = vsel %vm517, %v566, %v562
    %v568 = vlaneseq
    %v569 = vshrl.u32 %v568, 7
    %v570 = vsub.s32 %v519, %v569
    %v571 = vrot.slane %v438, %v570
    %v572 = vsel %vm524, %v571, %v567
    %v573 = vlaneseq
    %v574 = vshrl.u32 %v573, 7
    %v575 = vsub.s32 %v526, %v574
    %v576 = vrot.slane %v441, %v575
    %v577 = vsel %vm531, %v576, %v572
    %v578 = vlaneseq
    %v579 = vshrl.u32 %v578, 7
    %v580 = vsub.s32 %v533, %v579
    %v581 = vrot.slane %v444, %v580
    %v582 = vsel %vm538, %v581, %v577
    %v583 = vlaneseq
    %v584 = vshrl.u32 %v583, 7
    %v585 = vsub.s32 %v540, %v584
    %v586 = vrot.slane %v447, %v585
    %v587 = vsel %vm545, %v586, %v582
    %v588 = vlaneseq
    %v589 = vshrl.u32 %v588, 7
    %v590 = vsub.s32 %v547, %v589
    %v591 = vrot.slane %v450, %v590
    %v592 = vsel %vm552, %v591, %v587
    %v593 = vlaneseq
    %v594 = vshrl.u32 %v593, 7
    %v595 = vsub.s32 %v500, %v594
    %v596 = vrot.slane %v453, %v595
    %v597 = vlaneseq
    %v598 = vshrl.u32 %v597, 7
    %v599 = vsub.s32 %v505, %v598
    %v600 = vrot.slane %v456, %v599
    %v601 = vsel %vm510, %v600, %v596
    %v602 = vlaneseq
    %v603 = vshrl.u32 %v602, 7
    %v604 = vsub.s32 %v512, %v603
    %v605 = vrot.slane %v459, %v604
    %v606 = vsel %vm517, %v605, %v601
    %v607 = vlaneseq
    %v608 = vshrl.u32 %v607, 7
    %v609 = vsub.s32 %v519, %v608
    %v610 = vrot.slane %v462, %v609
    %v611 = vsel %vm524, %v610, %v606
    %v612 = vlaneseq
    %v613 = vshrl.u32 %v612, 7
    %v614 = vsub.s32 %v526, %v613
    %v615 = vrot.slane %v465, %v614
    %v616 = vsel %vm531, %v615, %v611
    %v617 = vlaneseq
    %v618 = vshrl.u32 %v617, 7
    %v619 = vsub.s32 %v533, %v618
    %v620 = vrot.slane %v468, %v619
    %v621 = vsel %vm538, %v620, %v616
    %v622 = vlaneseq
    %v623 = vshrl.u32 %v622, 7
    %v624 = vsub.s32 %v540, %v623
    %v625 = vrot.slane %v471, %v624
    %v626 = vsel %vm545, %v625, %v621
    %v627 = vlaneseq
    %v628 = vshrl.u32 %v627, 7
    %v629 = vsub.s32 %v547, %v628
    %v630 = vrot.slane %v474, %v629
    %v631 = vsel %vm552, %v630, %v626
    %v632 = vlaneseq
    %v633 = vshrl.u32 %v632, 7
    %v634 = vsub.s32 %v500, %v633
    %v635 = vrot.slane %v477, %v634
    %v636 = vlaneseq
    %v637 = vshrl.u32 %v636, 7
    %v638 = vsub.s32 %v505, %v637
    %v639 = vrot.slane %v480, %v638
    %v640 = vsel %vm510, %v639, %v635
    %v641 = vlaneseq
    %v642 = vshrl.u32 %v641, 7
    %v643 = vsub.s32 %v512, %v642
    %v644 = vrot.slane %v483, %v643
    %v645 = vsel %vm517, %v644, %v640
    %v646 = vlaneseq
    %v647 = vshrl.u32 %v646, 7
    %v648 = vsub.s32 %v519, %v647
    %v649 = vrot.slane %v486, %v648
    %v650 = vsel %vm524, %v649, %v645
    %v651 = vlaneseq
    %v652 = vshrl.u32 %v651, 7
    %v653 = vsub.s32 %v526, %v652
    %v654 = vrot.slane %v489, %v653
    %v655 = vsel %vm531, %v654, %v650
    %v656 = vlaneseq
    %v657 = vshrl.u32 %v656, 7
    %v658 = vsub.s32 %v533, %v657
    %v659 = vrot.slane %v492, %v658
    %v660 = vsel %vm538, %v659, %v655
    %v661 = vlaneseq
    %v662 = vshrl.u32 %v661, 7
    %v663 = vsub.s32 %v540, %v662
    %v664 = vrot.slane %v495, %v663
    %v665 = vsel %vm545, %v664, %v660
    %v666 = vlaneseq
    %v667 = vshrl.u32 %v666, 7
    %v668 = vsub.s32 %v547, %v667
    %v669 = vrot.slane %v498, %v668
    %v670 = vsel %vm552, %v669, %v665
    %vm671 = vcmask 1041409
    %v672 = vsel %vm671, %v592, %v553
    %vm673 = vcmask 1042434
    %v674 = vsel %vm673, %v631, %v672
    %vm675 = vcmask 1043459
    %v676 = vsel %vm675, %v670, %v674
    %vm678 = vcmask 519168
    %v679 = vsel %vm678, %v676, 0.0
    %680 = vadd.xlane.f32.xlu0 %v679
    %v681 = vpop.xlane.xlu0 %680
    %v682 = vrcp.pop 64.0
    %v683 = vmul.f32 %v681, %v682
    %v685 = vlaneseq
    %v686 = vshrl.u32 %v685, 7
    %v687 = vsub.s32 0, %v686
    %v688 = vrot.slane %v683, %v687
    %v689 = vlaneseq
    %v690 = vshrl.u32 %v689, 7
    %v691 = vsub.s32 1, %v690
    %v692 = vrot.slane %v683, %v691
    %v693 = vlaneseq
    %v694 = vshrl.u32 %v693, 7
    %v695 = vsub.s32 2, %v694
    %v696 = vrot.slane %v683, %v695
    %v697 = vlaneseq
    %v698 = vshrl.u32 %v697, 7
    %v699 = vsub.s32 3, %v698
    %v700 = vrot.slane %v683, %v699
    %v705 = vsub.f32 %v339, %v688
    %v706 = vsub.f32 %v340, %v688
    %v707 = vsub.f32 %v341, %v688
    %v708 = vsub.f32 %v342, %v688
    %v709 = vsub.f32 %v343, %v688
    %v710 = vsub.f32 %v344, %v688
    %v711 = vsub.f32 %v345, %v688
    %v712 = vsub.f32 %v346, %v688
    %v713 = vsub.f32 %v347, %v692
    %v714 = vsub.f32 %v348, %v692
    %v715 = vsub.f32 %v349, %v692
    %v716 = vsub.f32 %v350, %v692
    %v717 = vsub.f32 %v351, %v692
    %v718 = vsub.f32 %v352, %v692
    %v719 = vsub.f32 %v353, %v692
    %v720 = vsub.f32 %v354, %v692
    %v721 = vsub.f32 %v355, %v696
    %v722 = vsub.f32 %v356, %v696
    %v723 = vsub.f32 %v357, %v696
    %v724 = vsub.f32 %v358, %v696
    %v725 = vsub.f32 %v359, %v696
    %v726 = vsub.f32 %v360, %v696
    %v727 = vsub.f32 %v361, %v696
    %v728 = vsub.f32 %v362, %v696
    %v729 = vsub.f32 %v363, %v700
    %v730 = vsub.f32 %v364, %v700
    %v731 = vsub.f32 %v365, %v700
    %v732 = vsub.f32 %v366, %v700
    %v733 = vsub.f32 %v367, %v700
    %v734 = vsub.f32 %v368, %v700
    %v735 = vsub.f32 %v369, %v700
    %v736 = vsub.f32 %v370, %v700
    %v737 = vmul.f32 %v705, %v705
    %v738 = vmul.f32 %v706, %v706
    %v739 = vmul.f32 %v707, %v707
    %v740 = vmul.f32 %v708, %v708
    %v741 = vmul.f32 %v709, %v709
    %v742 = vmul.f32 %v710, %v710
    %v743 = vmul.f32 %v711, %v711
    %v744 = vmul.f32 %v712, %v712
    %v745 = vmul.f32 %v713, %v713
    %v746 = vmul.f32 %v714, %v714
    %v747 = vmul.f32 %v715, %v715
    %v748 = vmul.f32 %v716, %v716
    %v749 = vmul.f32 %v717, %v717
    %v750 = vmul.f32 %v718, %v718
    %v751 = vmul.f32 %v719, %v719
    %v752 = vmul.f32 %v720, %v720
    %v753 = vmul.f32 %v721, %v721
    %v754 = vmul.f32 %v722, %v722
    %v755 = vmul.f32 %v723, %v723
    %v756 = vmul.f32 %v724, %v724
    %v757 = vmul.f32 %v725, %v725
    %v758 = vmul.f32 %v726, %v726
    %v759 = vmul.f32 %v727, %v727
    %v760 = vmul.f32 %v728, %v728
    %v761 = vmul.f32 %v729, %v729
    %v762 = vmul.f32 %v730, %v730
    %v763 = vmul.f32 %v731, %v731
    %v764 = vmul.f32 %v732, %v732
    %v765 = vmul.f32 %v733, %v733
    %v766 = vmul.f32 %v734, %v734
    %v767 = vmul.f32 %v735, %v735
    %v768 = vmul.f32 %v736, %v736
    %801 = vset.pattern.permute.xlu0 0
    %802 = vperm.xlu0 %801, %v737
    %v803 = vpop.permute.xlu0 %802
    %804 = vset.pattern.permute.xlu0 0
    %805 = vperm.xlu0 %804, %v738
    %v806 = vpop.permute.xlu0 %805
    %807 = vset.pattern.permute.xlu0 0
    %808 = vperm.xlu0 %807, %v739
    %v809 = vpop.permute.xlu0 %808
    %810 = vset.pattern.permute.xlu0 0
    %811 = vperm.xlu0 %810, %v740
    %v812 = vpop.permute.xlu0 %811
    %813 = vset.pattern.permute.xlu0 0
    %814 = vperm.xlu0 %813, %v741
    %v815 = vpop.permute.xlu0 %814
    %816 = vset.pattern.permute.xlu0 0
    %817 = vperm.xlu0 %816, %v742
    %v818 = vpop.permute.xlu0 %817
    %819 = vset.pattern.permute.xlu0 0
    %820 = vperm.xlu0 %819, %v743
    %v821 = vpop.permute.xlu0 %820
    %822 = vset.pattern.permute.xlu0 0
    %823 = vperm.xlu0 %822, %v744
    %v824 = vpop.permute.xlu0 %823
    %825 = vset.pattern.permute.xlu0 0
    %826 = vperm.xlu0 %825, %v745
    %v827 = vpop.permute.xlu0 %826
    %828 = vset.pattern.permute.xlu0 0
    %829 = vperm.xlu0 %828, %v746
    %v830 = vpop.permute.xlu0 %829
    %831 = vset.pattern.permute.xlu0 0
    %832 = vperm.xlu0 %831, %v747
    %v833 = vpop.permute.xlu0 %832
    %834 = vset.pattern.permute.xlu0 0
    %835 = vperm.xlu0 %834, %v748
    %v836 = vpop.permute.xlu0 %835
    %837 = vset.pattern.permute.xlu0 0
    %838 = vperm.xlu0 %837, %v749
    %v839 = vpop.permute.xlu0 %838
    %840 = vset.pattern.permute.xlu0 0
    %841 = vperm.xlu0 %840, %v750
    %v842 = vpop.permute.xlu0 %841
    %843 = vset.pattern.permute.xlu0 0
    %844 = vperm.xlu0 %843, %v751
    %v845 = vpop.permute.xlu0 %844
    %846 = vset.pattern.permute.xlu0 0
    %847 = vperm.xlu0 %846, %v752
    %v848 = vpop.permute.xlu0 %847
    %849 = vset.pattern.permute.xlu0 0
    %850 = vperm.xlu0 %849, %v753
    %v851 = vpop.permute.xlu0 %850
    %852 = vset.pattern.permute.xlu0 0
    %853 = vperm.xlu0 %852, %v754
    %v854 = vpop.permute.xlu0 %853
    %855 = vset.pattern.permute.xlu0 0
    %856 = vperm.xlu0 %855, %v755
    %v857 = vpop.permute.xlu0 %856
    %858 = vset.pattern.permute.xlu0 0
    %859 = vperm.xlu0 %858, %v756
    %v860 = vpop.permute.xlu0 %859
    %861 = vset.pattern.permute.xlu0 0
    %862 = vperm.xlu0 %861, %v757
    %v863 = vpop.permute.xlu0 %862
    %864 = vset.pattern.permute.xlu0 0
    %865 = vperm.xlu0 %864, %v758
    %v866 = vpop.permute.xlu0 %865
    %867 = vset.pattern.permute.xlu0 0
    %868 = vperm.xlu0 %867, %v759
    %v869 = vpop.permute.xlu0 %868
    %870 = vset.pattern.permute.xlu0 0
    %871 = vperm.xlu0 %870, %v760
    %v872 = vpop.permute.xlu0 %871
    %873 = vset.pattern.permute.xlu0 0
    %874 = vperm.xlu0 %873, %v761
    %v875 = vpop.permute.xlu0 %874
    %876 = vset.pattern.permute.xlu0 0
    %877 = vperm.xlu0 %876, %v762
    %v878 = vpop.permute.xlu0 %877
    %879 = vset.pattern.permute.xlu0 0
    %880 = vperm.xlu0 %879, %v763
    %v881 = vpop.permute.xlu0 %880
    %882 = vset.pattern.permute.xlu0 0
    %883 = vperm.xlu0 %882, %v764
    %v884 = vpop.permute.xlu0 %883
    %885 = vset.pattern.permute.xlu0 0
    %886 = vperm.xlu0 %885, %v765
    %v887 = vpop.permute.xlu0 %886
    %888 = vset.pattern.permute.xlu0 0
    %889 = vperm.xlu0 %888, %v766
    %v890 = vpop.permute.xlu0 %889
    %891 = vset.pattern.permute.xlu0 0
    %892 = vperm.xlu0 %891, %v767
    %v893 = vpop.permute.xlu0 %892
    %894 = vset.pattern.permute.xlu0 0
    %895 = vperm.xlu0 %894, %v768
    %v896 = vpop.permute.xlu0 %895
    %v897 = vlaneseq
    %v898 = vshrl.u32 %v897, 7
    %v899 = vsub.s32 %v500, %v898
    %v900 = vrot.slane %v803, %v899
    %v901 = vlaneseq
    %v902 = vshrl.u32 %v901, 7
    %v903 = vsub.s32 %v505, %v902
    %v904 = vrot.slane %v806, %v903
    %v905 = vsel %vm510, %v904, %v900
    %v906 = vlaneseq
    %v907 = vshrl.u32 %v906, 7
    %v908 = vsub.s32 %v512, %v907
    %v909 = vrot.slane %v809, %v908
    %v910 = vsel %vm517, %v909, %v905
    %v911 = vlaneseq
    %v912 = vshrl.u32 %v911, 7
    %v913 = vsub.s32 %v519, %v912
    %v914 = vrot.slane %v812, %v913
    %v915 = vsel %vm524, %v914, %v910
    %v916 = vlaneseq
    %v917 = vshrl.u32 %v916, 7
    %v918 = vsub.s32 %v526, %v917
    %v919 = vrot.slane %v815, %v918
    %v920 = vsel %vm531, %v919, %v915
    %v921 = vlaneseq
    %v922 = vshrl.u32 %v921, 7
    %v923 = vsub.s32 %v533, %v922
    %v924 = vrot.slane %v818, %v923
    %v925 = vsel %vm538, %v924, %v920
    %v926 = vlaneseq
    %v927 = vshrl.u32 %v926, 7
    %v928 = vsub.s32 %v540, %v927
    %v929 = vrot.slane %v821, %v928
    %v930 = vsel %vm545, %v929, %v925
    %v931 = vlaneseq
    %v932 = vshrl.u32 %v931, 7
    %v933 = vsub.s32 %v547, %v932
    %v934 = vrot.slane %v824, %v933
    %v935 = vsel %vm552, %v934, %v930
    %v936 = vlaneseq
    %v937 = vshrl.u32 %v936, 7
    %v938 = vsub.s32 %v500, %v937
    %v939 = vrot.slane %v827, %v938
    %v940 = vlaneseq
    %v941 = vshrl.u32 %v940, 7
    %v942 = vsub.s32 %v505, %v941
    %v943 = vrot.slane %v830, %v942
    %v944 = vsel %vm510, %v943, %v939
    %v945 = vlaneseq
    %v946 = vshrl.u32 %v945, 7
    %v947 = vsub.s32 %v512, %v946
    %v948 = vrot.slane %v833, %v947
    %v949 = vsel %vm517, %v948, %v944
    %v950 = vlaneseq
    %v951 = vshrl.u32 %v950, 7
    %v952 = vsub.s32 %v519, %v951
    %v953 = vrot.slane %v836, %v952
    %v954 = vsel %vm524, %v953, %v949
    %v955 = vlaneseq
    %v956 = vshrl.u32 %v955, 7
    %v957 = vsub.s32 %v526, %v956
    %v958 = vrot.slane %v839, %v957
    %v959 = vsel %vm531, %v958, %v954
    %v960 = vlaneseq
    %v961 = vshrl.u32 %v960, 7
    %v962 = vsub.s32 %v533, %v961
    %v963 = vrot.slane %v842, %v962
    %v964 = vsel %vm538, %v963, %v959
    %v965 = vlaneseq
    %v966 = vshrl.u32 %v965, 7
    %v967 = vsub.s32 %v540, %v966
    %v968 = vrot.slane %v845, %v967
    %v969 = vsel %vm545, %v968, %v964
    %v970 = vlaneseq
    %v971 = vshrl.u32 %v970, 7
    %v972 = vsub.s32 %v547, %v971
    %v973 = vrot.slane %v848, %v972
    %v974 = vsel %vm552, %v973, %v969
    %v975 = vlaneseq
    %v976 = vshrl.u32 %v975, 7
    %v977 = vsub.s32 %v500, %v976
    %v978 = vrot.slane %v851, %v977
    %v979 = vlaneseq
    %v980 = vshrl.u32 %v979, 7
    %v981 = vsub.s32 %v505, %v980
    %v982 = vrot.slane %v854, %v981
    %v983 = vsel %vm510, %v982, %v978
    %v984 = vlaneseq
    %v985 = vshrl.u32 %v984, 7
    %v986 = vsub.s32 %v512, %v985
    %v987 = vrot.slane %v857, %v986
    %v988 = vsel %vm517, %v987, %v983
    %v989 = vlaneseq
    %v990 = vshrl.u32 %v989, 7
    %v991 = vsub.s32 %v519, %v990
    %v992 = vrot.slane %v860, %v991
    %v993 = vsel %vm524, %v992, %v988
    %v994 = vlaneseq
    %v995 = vshrl.u32 %v994, 7
    %v996 = vsub.s32 %v526, %v995
    %v997 = vrot.slane %v863, %v996
    %v998 = vsel %vm531, %v997, %v993
    %v999 = vlaneseq
    %v1000 = vshrl.u32 %v999, 7
    %v1001 = vsub.s32 %v533, %v1000
    %v1002 = vrot.slane %v866, %v1001
    %v1003 = vsel %vm538, %v1002, %v998
    %v1004 = vlaneseq
    %v1005 = vshrl.u32 %v1004, 7
    %v1006 = vsub.s32 %v540, %v1005
    %v1007 = vrot.slane %v869, %v1006
    %v1008 = vsel %vm545, %v1007, %v1003
    %v1009 = vlaneseq
    %v1010 = vshrl.u32 %v1009, 7
    %v1011 = vsub.s32 %v547, %v1010
    %v1012 = vrot.slane %v872, %v1011
    %v1013 = vsel %vm552, %v1012, %v1008
    %v1014 = vlaneseq
    %v1015 = vshrl.u32 %v1014, 7
    %v1016 = vsub.s32 %v500, %v1015
    %v1017 = vrot.slane %v875, %v1016
    %v1018 = vlaneseq
    %v1019 = vshrl.u32 %v1018, 7
    %v1020 = vsub.s32 %v505, %v1019
    %v1021 = vrot.slane %v878, %v1020
    %v1022 = vsel %vm510, %v1021, %v1017
    %v1023 = vlaneseq
    %v1024 = vshrl.u32 %v1023, 7
    %v1025 = vsub.s32 %v512, %v1024
    %v1026 = vrot.slane %v881, %v1025
    %v1027 = vsel %vm517, %v1026, %v1022
    %v1028 = vlaneseq
    %v1029 = vshrl.u32 %v1028, 7
    %v1030 = vsub.s32 %v519, %v1029
    %v1031 = vrot.slane %v884, %v1030
    %v1032 = vsel %vm524, %v1031, %v1027
    %v1033 = vlaneseq
    %v1034 = vshrl.u32 %v1033, 7
    %v1035 = vsub.s32 %v526, %v1034
    %v1036 = vrot.slane %v887, %v1035
    %v1037 = vsel %vm531, %v1036, %v1032
    %v1038 = vlaneseq
    %v1039 = vshrl.u32 %v1038, 7
    %v1040 = vsub.s32 %v533, %v1039
    %v1041 = vrot.slane %v890, %v1040
    %v1042 = vsel %vm538, %v1041, %v1037
    %v1043 = vlaneseq
    %v1044 = vshrl.u32 %v1043, 7
    %v1045 = vsub.s32 %v540, %v1044
    %v1046 = vrot.slane %v893, %v1045
    %v1047 = vsel %vm545, %v1046, %v1042
    %v1048 = vlaneseq
    %v1049 = vshrl.u32 %v1048, 7
    %v1050 = vsub.s32 %v547, %v1049
    %v1051 = vrot.slane %v896, %v1050
    %v1052 = vsel %vm552, %v1051, %v1047
    %v1053 = vsel %vm671, %v974, %v935
    %v1054 = vsel %vm673, %v1013, %v1053
    %v1055 = vsel %vm675, %v1052, %v1054
    %v1057 = vsel %vm678, %v1055, 0.0
    %1058 = vadd.xlane.f32.xlu0 %v1057
    %v1059 = vpop.xlane.xlu0 %1058
    %v1060 = vmul.f32 %v1059, %v682
    %v1061 = vadd.f32 %v1060, 1e-05
    %v1062 = vrsqrt.pop %v1061
    %v1064 = vlaneseq
    %v1065 = vshrl.u32 %v1064, 7
    %v1066 = vsub.s32 0, %v1065
    %v1067 = vrot.slane %v1062, %v1066
    %v1068 = vlaneseq
    %v1069 = vshrl.u32 %v1068, 7
    %v1070 = vsub.s32 1, %v1069
    %v1071 = vrot.slane %v1062, %v1070
    %v1072 = vlaneseq
    %v1073 = vshrl.u32 %v1072, 7
    %v1074 = vsub.s32 2, %v1073
    %v1075 = vrot.slane %v1062, %v1074
    %v1076 = vlaneseq
    %v1077 = vshrl.u32 %v1076, 7
    %v1078 = vsub.s32 3, %v1077
    %v1079 = vrot.slane %v1062, %v1078
    %v1084 = vmul.f32 %v705, %v1067
    %v1085 = vmul.f32 %v706, %v1067
    %v1086 = vmul.f32 %v707, %v1067
    %v1087 = vmul.f32 %v708, %v1067
    %v1088 = vmul.f32 %v709, %v1067
    %v1089 = vmul.f32 %v710, %v1067
    %v1090 = vmul.f32 %v711, %v1067
    %v1091 = vmul.f32 %v712, %v1067
    %v1092 = vmul.f32 %v713, %v1071
    %v1093 = vmul.f32 %v714, %v1071
    %v1094 = vmul.f32 %v715, %v1071
    %v1095 = vmul.f32 %v716, %v1071
    %v1096 = vmul.f32 %v717, %v1071
    %v1097 = vmul.f32 %v718, %v1071
    %v1098 = vmul.f32 %v719, %v1071
    %v1099 = vmul.f32 %v720, %v1071
    %v1100 = vmul.f32 %v721, %v1075
    %v1101 = vmul.f32 %v722, %v1075
    %v1102 = vmul.f32 %v723, %v1075
    %v1103 = vmul.f32 %v724, %v1075
    %v1104 = vmul.f32 %v725, %v1075
    %v1105 = vmul.f32 %v726, %v1075
    %v1106 = vmul.f32 %v727, %v1075
    %v1107 = vmul.f32 %v728, %v1075
    %v1108 = vmul.f32 %v729, %v1079
    %v1109 = vmul.f32 %v730, %v1079
    %v1110 = vmul.f32 %v731, %v1079
    %v1111 = vmul.f32 %v732, %v1079
    %v1112 = vmul.f32 %v733, %v1079
    %v1113 = vmul.f32 %v734, %v1079
    %v1114 = vmul.f32 %v735, %v1079
    %v1115 = vmul.f32 %v736, %v1079
    %v1116 = vld [vmem:[#allocation5] sm:$0xff]
    %v1117 = vld [vmem:[#allocation5 + $0x8] sm:$0xff]
    %v1118 = vld [vmem:[#allocation5 + $0x10] sm:$0xff]
    %v1119 = vld [vmem:[#allocation5 + $0x18] sm:$0xff]
    %v1120 = vld [vmem:[#allocation5 + $0x20] sm:$0xff]
    %v1121 = vld [vmem:[#allocation5 + $0x28] sm:$0xff]
    %v1122 = vld [vmem:[#allocation5 + $0x30] sm:$0xff]
    %v1123 = vld [vmem:[#allocation5 + $0x38] sm:$0xff]
    %v1124 = vld [vmem:[#allocation7 + $0x3] sm:$0x1]
    %v1125 = vlaneseq
    %v1126 = vshrl.u32 %v1125, 7
    %v1127 = vsub.s32 0, %v1126
    %v1128 = vrot.slane %v1124, %v1127
    %1161 = vset.pattern.permute.xlu0 0
    %1162 = vperm.xlu0 %1161, %v1084
    %v1163 = vpop.permute.xlu0 %1162
    %1164 = vset.pattern.permute.xlu0 0
    %1165 = vperm.xlu0 %1164, %v1085
    %v1166 = vpop.permute.xlu0 %1165
    %1167 = vset.pattern.permute.xlu0 0
    %1168 = vperm.xlu0 %1167, %v1086
    %v1169 = vpop.permute.xlu0 %1168
    %1170 = vset.pattern.permute.xlu0 0
    %1171 = vperm.xlu0 %1170, %v1087
    %v1172 = vpop.permute.xlu0 %1171
    %1173 = vset.pattern.permute.xlu0 0
    %1174 = vperm.xlu0 %1173, %v1088
    %v1175 = vpop.permute.xlu0 %1174
    %1176 = vset.pattern.permute.xlu0 0
    %1177 = vperm.xlu0 %1176, %v1089
    %v1178 = vpop.permute.xlu0 %1177
    %1179 = vset.pattern.permute.xlu0 0
    %1180 = vperm.xlu0 %1179, %v1090
    %v1181 = vpop.permute.xlu0 %1180
    %1182 = vset.pattern.permute.xlu0 0
    %1183 = vperm.xlu0 %1182, %v1091
    %v1184 = vpop.permute.xlu0 %1183
    %1185 = vset.pattern.permute.xlu0 0
    %1186 = vperm.xlu0 %1185, %v1092
    %v1187 = vpop.permute.xlu0 %1186
    %1188 = vset.pattern.permute.xlu0 0
    %1189 = vperm.xlu0 %1188, %v1093
    %v1190 = vpop.permute.xlu0 %1189
    %1191 = vset.pattern.permute.xlu0 0
    %1192 = vperm.xlu0 %1191, %v1094
    %v1193 = vpop.permute.xlu0 %1192
    %1194 = vset.pattern.permute.xlu0 0
    %1195 = vperm.xlu0 %1194, %v1095
    %v1196 = vpop.permute.xlu0 %1195
    %1197 = vset.pattern.permute.xlu0 0
    %1198 = vperm.xlu0 %1197, %v1096
    %v1199 = vpop.permute.xlu0 %1198
    %1200 = vset.pattern.permute.xlu0 0
    %1201 = vperm.xlu0 %1200, %v1097
    %v1202 = vpop.permute.xlu0 %1201
    %1203 = vset.pattern.permute.xlu0 0
    %1204 = vperm.xlu0 %1203, %v1098
    %v1205 = vpop.permute.xlu0 %1204
    %1206 = vset.pattern.permute.xlu0 0
    %1207 = vperm.xlu0 %1206, %v1099
    %v1208 = vpop.permute.xlu0 %1207
    %1209 = vset.pattern.permute.xlu0 0
    %1210 = vperm.xlu0 %1209, %v1100
    %v1211 = vpop.permute.xlu0 %1210
    %1212 = vset.pattern.permute.xlu0 0
    %1213 = vperm.xlu0 %1212, %v1101
    %v1214 = vpop.permute.xlu0 %1213
    %1215 = vset.pattern.permute.xlu0 0
    %1216 = vperm.xlu0 %1215, %v1102
    %v1217 = vpop.permute.xlu0 %1216
    %1218 = vset.pattern.permute.xlu0 0
    %1219 = vperm.xlu0 %1218, %v1103
    %v1220 = vpop.permute.xlu0 %1219
    %1221 = vset.pattern.permute.xlu0 0
    %1222 = vperm.xlu0 %1221, %v1104
    %v1223 = vpop.permute.xlu0 %1222
    %1224 = vset.pattern.permute.xlu0 0
    %1225 = vperm.xlu0 %1224, %v1105
    %v1226 = vpop.permute.xlu0 %1225
    %1227 = vset.pattern.permute.xlu0 0
    %1228 = vperm.xlu0 %1227, %v1106
    %v1229 = vpop.permute.xlu0 %1228
    %1230 = vset.pattern.permute.xlu0 0
    %1231 = vperm.xlu0 %1230, %v1107
    %v1232 = vpop.permute.xlu0 %1231
    %1233 = vset.pattern.permute.xlu0 0
    %1234 = vperm.xlu0 %1233, %v1108
    %v1235 = vpop.permute.xlu0 %1234
    %1236 = vset.pattern.permute.xlu0 0
    %1237 = vperm.xlu0 %1236, %v1109
    %v1238 = vpop.permute.xlu0 %1237
    %1239 = vset.pattern.permute.xlu0 0
    %1240 = vperm.xlu0 %1239, %v1110
    %v1241 = vpop.permute.xlu0 %1240
    %1242 = vset.pattern.permute.xlu0 0
    %1243 = vperm.xlu0 %1242, %v1111
    %v1244 = vpop.permute.xlu0 %1243
    %1245 = vset.pattern.permute.xlu0 0
    %1246 = vperm.xlu0 %1245, %v1112
    %v1247 = vpop.permute.xlu0 %1246
    %1248 = vset.pattern.permute.xlu0 0
    %1249 = vperm.xlu0 %1248, %v1113
    %v1250 = vpop.permute.xlu0 %1249
    %1251 = vset.pattern.permute.xlu0 0
    %1252 = vperm.xlu0 %1251, %v1114
    %v1253 = vpop.permute.xlu0 %1252
    %1254 = vset.pattern.permute.xlu0 0
    %1255 = vperm.xlu0 %1254, %v1115
    %v1256 = vpop.permute.xlu0 %1255
    %v1257 = vlaneseq
    %v1258 = vshrl.u32 %v1257, 7
    %v1259 = vsub.s32 %v500, %v1258
    %v1260 = vrot.slane %v1163, %v1259
    %v1261 = vlaneseq
    %v1262 = vshrl.u32 %v1261, 7
    %v1263 = vsub.s32 %v505, %v1262
    %v1264 = vrot.slane %v1166, %v1263
    %v1265 = vsel %vm510, %v1264, %v1260
    %v1266 = vlaneseq
    %v1267 = vshrl.u32 %v1266, 7
    %v1268 = vsub.s32 %v512, %v1267
    %v1269 = vrot.slane %v1169, %v1268
    %v1270 = vsel %vm517, %v1269, %v1265
    %v1271 = vlaneseq
    %v1272 = vshrl.u32 %v1271, 7
    %v1273 = vsub.s32 %v519, %v1272
    %v1274 = vrot.slane %v1172, %v1273
    %v1275 = vsel %vm524, %v1274, %v1270
    %v1276 = vlaneseq
    %v1277 = vshrl.u32 %v1276, 7
    %v1278 = vsub.s32 %v526, %v1277
    %v1279 = vrot.slane %v1175, %v1278
    %v1280 = vsel %vm531, %v1279, %v1275
    %v1281 = vlaneseq
    %v1282 = vshrl.u32 %v1281, 7
    %v1283 = vsub.s32 %v533, %v1282
    %v1284 = vrot.slane %v1178, %v1283
    %v1285 = vsel %vm538, %v1284, %v1280
    %v1286 = vlaneseq
    %v1287 = vshrl.u32 %v1286, 7
    %v1288 = vsub.s32 %v540, %v1287
    %v1289 = vrot.slane %v1181, %v1288
    %v1290 = vsel %vm545, %v1289, %v1285
    %v1291 = vlaneseq
    %v1292 = vshrl.u32 %v1291, 7
    %v1293 = vsub.s32 %v547, %v1292
    %v1294 = vrot.slane %v1184, %v1293
    %v1295 = vsel %vm552, %v1294, %v1290
    %v1296 = vlaneseq
    %v1297 = vshrl.u32 %v1296, 7
    %v1298 = vsub.s32 %v500, %v1297
    %v1299 = vrot.slane %v1187, %v1298
    %v1300 = vlaneseq
    %v1301 = vshrl.u32 %v1300, 7
    %v1302 = vsub.s32 %v505, %v1301
    %v1303 = vrot.slane %v1190, %v1302
    %v1304 = vsel %vm510, %v1303, %v1299
    %v1305 = vlaneseq
    %v1306 = vshrl.u32 %v1305, 7
    %v1307 = vsub.s32 %v512, %v1306
    %v1308 = vrot.slane %v1193, %v1307
    %v1309 = vsel %vm517, %v1308, %v1304
    %v1310 = vlaneseq
    %v1311 = vshrl.u32 %v1310, 7
    %v1312 = vsub.s32 %v519, %v1311
    %v1313 = vrot.slane %v1196, %v1312
    %v1314 = vsel %vm524, %v1313, %v1309
    %v1315 = vlaneseq
    %v1316 = vshrl.u32 %v1315, 7
    %v1317 = vsub.s32 %v526, %v1316
    %v1318 = vrot.slane %v1199, %v1317
    %v1319 = vsel %vm531, %v1318, %v1314
    %v1320 = vlaneseq
    %v1321 = vshrl.u32 %v1320, 7
    %v1322 = vsub.s32 %v533, %v1321
    %v1323 = vrot.slane %v1202, %v1322
    %v1324 = vsel %vm538, %v1323, %v1319
    %v1325 = vlaneseq
    %v1326 = vshrl.u32 %v1325, 7
    %v1327 = vsub.s32 %v540, %v1326
    %v1328 = vrot.slane %v1205, %v1327
    %v1329 = vsel %vm545, %v1328, %v1324
    %v1330 = vlaneseq
    %v1331 = vshrl.u32 %v1330, 7
    %v1332 = vsub.s32 %v547, %v1331
    %v1333 = vrot.slane %v1208, %v1332
    %v1334 = vsel %vm552, %v1333, %v1329
    %v1335 = vlaneseq
    %v1336 = vshrl.u32 %v1335, 7
    %v1337 = vsub.s32 %v500, %v1336
    %v1338 = vrot.slane %v1211, %v1337
    %v1339 = vlaneseq
    %v1340 = vshrl.u32 %v1339, 7
    %v1341 = vsub.s32 %v505, %v1340
    %v1342 = vrot.slane %v1214, %v1341
    %v1343 = vsel %vm510, %v1342, %v1338
    %v1344 = vlaneseq
    %v1345 = vshrl.u32 %v1344, 7
    %v1346 = vsub.s32 %v512, %v1345
    %v1347 = vrot.slane %v1217, %v1346
    %v1348 = vsel %vm517, %v1347, %v1343
    %v1349 = vlaneseq
    %v1350 = vshrl.u32 %v1349, 7
    %v1351 = vsub.s32 %v519, %v1350
    %v1352 = vrot.slane %v1220, %v1351
    %v1353 = vsel %vm524, %v1352, %v1348
    %v1354 = vlaneseq
    %v1355 = vshrl.u32 %v1354, 7
    %v1356 = vsub.s32 %v526, %v1355
    %v1357 = vrot.slane %v1223, %v1356
    %v1358 = vsel %vm531, %v1357, %v1353
    %v1359 = vlaneseq
    %v1360 = vshrl.u32 %v1359, 7
    %v1361 = vsub.s32 %v533, %v1360
    %v1362 = vrot.slane %v1226, %v1361
    %v1363 = vsel %vm538, %v1362, %v1358
    %v1364 = vlaneseq
    %v1365 = vshrl.u32 %v1364, 7
    %v1366 = vsub.s32 %v540, %v1365
    %v1367 = vrot.slane %v1229, %v1366
    %v1368 = vsel %vm545, %v1367, %v1363
    %v1369 = vlaneseq
    %v1370 = vshrl.u32 %v1369, 7
    %v1371 = vsub.s32 %v547, %v1370
    %v1372 = vrot.slane %v1232, %v1371
    %v1373 = vsel %vm552, %v1372, %v1368
    %v1374 = vlaneseq
    %v1375 = vshrl.u32 %v1374, 7
    %v1376 = vsub.s32 %v500, %v1375
    %v1377 = vrot.slane %v1235, %v1376
    %v1378 = vlaneseq
    %v1379 = vshrl.u32 %v1378, 7
    %v1380 = vsub.s32 %v505, %v1379
    %v1381 = vrot.slane %v1238, %v1380
    %v1382 = vsel %vm510, %v1381, %v1377
    %v1383 = vlaneseq
    %v1384 = vshrl.u32 %v1383, 7
    %v1385 = vsub.s32 %v512, %v1384
    %v1386 = vrot.slane %v1241, %v1385
    %v1387 = vsel %vm517, %v1386, %v1382
    %v1388 = vlaneseq
    %v1389 = vshrl.u32 %v1388, 7
    %v1390 = vsub.s32 %v519, %v1389
    %v1391 = vrot.slane %v1244, %v1390
    %v1392 = vsel %vm524, %v1391, %v1387
    %v1393 = vlaneseq
    %v1394 = vshrl.u32 %v1393, 7
    %v1395 = vsub.s32 %v526, %v1394
    %v1396 = vrot.slane %v1247, %v1395
    %v1397 = vsel %vm531, %v1396, %v1392
    %v1398 = vlaneseq
    %v1399 = vshrl.u32 %v1398, 7
    %v1400 = vsub.s32 %v533, %v1399
    %v1401 = vrot.slane %v1250, %v1400
    %v1402 = vsel %vm538, %v1401, %v1397
    %v1403 = vlaneseq
    %v1404 = vshrl.u32 %v1403, 7
    %v1405 = vsub.s32 %v540, %v1404
    %v1406 = vrot.slane %v1253, %v1405
    %v1407 = vsel %vm545, %v1406, %v1402
    %v1408 = vlaneseq
    %v1409 = vshrl.u32 %v1408, 7
    %v1410 = vsub.s32 %v547, %v1409
    %v1411 = vrot.slane %v1256, %v1410
    %v1412 = vsel %vm552, %v1411, %v1407
    %v1413 = vsel %vm671, %v1334, %v1295
    %v1414 = vsel %vm673, %v1373, %v1413
    %v1415 = vsel %vm675, %v1412, %v1414
    %vm1416 = vcmask 523264
    %v1417 = vsel %vm1416, %v1415, 0
    %1419 = vmatprep.subr.mxu0 0.0
    %1420 = vmatpush1.msra.mxu0 0.0
    %1421 = vmatprep.subr.mxu0 0.0
    %1422 = vmatpush1.msra.mxu0 0.0
    %1423 = vmatprep.subr.mxu0 0.0
    %1424 = vmatpush1.msra.mxu0 0.0
    %1425 = vmatprep.subr.mxu0 0.0
    %1426 = vmatpush1.msra.mxu0 0.0
    %1427 = vmatprep.subr.mxu0 0.0
    %1428 = vmatpush1.msra.mxu0 0.0
    %1429 = vmatprep.subr.mxu0 0.0
    %1430 = vmatpush1.msra.mxu0 0.0
    %1431 = vmatprep.subr.mxu0 0.0
    %1432 = vmatpush1.msra.mxu0 0.0
    %1433 = vmatprep.subr.mxu0 0.0
    %1434 = vmatpush1.msra.mxu0 0.0
    %1435 = vmatprep.subr.mxu0 0.0
    %1436 = vmatpush1.msra.mxu0 %v1123
    %1437 = vmatprep.subr.mxu0 0.0
    %1438 = vmatpush1.msra.mxu0 %v1122
    %1439 = vmatprep.subr.mxu0 0.0
    %1440 = vmatpush1.msra.mxu0 %v1121
    %1441 = vmatprep.subr.mxu0 0.0
    %1442 = vmatpush1.msra.mxu0 %v1120
    %1443 = vmatprep.subr.mxu0 0.0
    %1444 = vmatpush1.msra.mxu0 %v1119
    %1445 = vmatprep.subr.mxu0 0.0
    %1446 = vmatpush1.msra.mxu0 %v1118
    %1447 = vmatprep.subr.mxu0 0.0
    %1448 = vmatpush1.msra.mxu0 %v1117
    %1449 = vmatprep.subr.mxu0 0.0
    %1450 = vmatpush1.msra.mxu0 %v1116
    %1451 = vmatprep.subr.mxu0 0.0
    %1452 = vmatpush2.msra.mxu0 0.0
    %1453 = vmatprep.subr.mxu0 0.0
    %1454 = vmatpush2.msra.mxu0 0.0
    %1455 = vmatprep.subr.mxu0 0.0
    %1456 = vmatpush2.msra.mxu0 0.0
    %1457 = vmatprep.subr.mxu0 0.0
    %1458 = vmatpush2.msra.mxu0 0.0
    %1459 = vmatprep.subr.mxu0 0.0
    %1460 = vmatpush2.msra.mxu0 0.0
    %1461 = vmatprep.subr.mxu0 0.0
    %1462 = vmatpush2.msra.mxu0 0.0
    %1463 = vmatprep.subr.mxu0 0.0
    %1464 = vmatpush2.msra.mxu0 0.0
    %1465 = vmatprep.subr.mxu0 0.0
    %1466 = vmatpush2.msra.mxu0 0.0
    %1467 = vmatprep.subr.mxu0 0.0
    %1468 = vmatpush2.msra.mxu0 0.0
    %1469 = vmatprep.subr.mxu0 0.0
    %1470 = vmatpush2.msra.mxu0 0.0
    %1471 = vmatprep.subr.mxu0 0.0
    %1472 = vmatpush2.msra.mxu0 0.0
    %1473 = vmatprep.subr.mxu0 0.0
    %1474 = vmatpush2.msra.mxu0 0.0
    %1475 = vmatprep.subr.mxu0 0.0
    %1476 = vmatpush2.msra.mxu0 0.0
    %1477 = vmatprep.subr.mxu0 0.0
    %1478 = vmatpush2.msra.mxu0 0.0
    %1479 = vmatprep.subr.mxu0 0.0
    %1480 = vmatpush2.msra.mxu0 0.0
    %1481 = vmatprep.subr.mxu0 0.0
    %1482 = vmatpush2.msra.mxu0 0.0
    %1483 = vmatprep.mubr.f32.mxu0 0.0
    %1484 = vmatmul.mubr.f32.gmra.mxu0 %v1417
    %v1485 = vpop.f32.mrf.mxu0
    %v1486 = vadd.f32 %v1128, %v1485
    %v1487 = vpop.f32.mrf.mxu0
    %1488 = vdwg.mxu0
    %v1489 = vmax.f32 %v1486, 0.0
    %s1490 = scalar_lea.vmem [#allocation5], 64
    %v1491 = vld [vmem:[%s1490] sm:$0xff]
    %v1492 = vld [vmem:[%s1490 + $0x8] sm:$0xff]
    %v1493 = vld [vmem:[%s1490 + $0x10] sm:$0xff]
    %v1494 = vld [vmem:[%s1490 + $0x18] sm:$0xff]
    %v1495 = vld [vmem:[%s1490 + $0x20] sm:$0xff]
    %v1496 = vld [vmem:[%s1490 + $0x28] sm:$0xff]
    %v1497 = vld [vmem:[%s1490 + $0x30] sm:$0xff]
    %v1498 = vld [vmem:[%s1490 + $0x38] sm:$0xff]
    %v1499 = vld [vmem:[#allocation7 + $0x4] sm:$0x1]
    %v1500 = vlaneseq
    %v1501 = vshrl.u32 %v1500, 7
    %v1502 = vsub.s32 0, %v1501
    %v1503 = vrot.slane %v1499, %v1502
    %v1505 = vsel %vm1416, %v1489, 0
    %1507 = vmatprep.subr.mxu0 0.0
    %1508 = vmatpush1.msra.mxu0 0.0
    %1509 = vmatprep.subr.mxu0 0.0
    %1510 = vmatpush1.msra.mxu0 0.0
    %1511 = vmatprep.subr.mxu0 0.0
    %1512 = vmatpush1.msra.mxu0 0.0
    %1513 = vmatprep.subr.mxu0 0.0
    %1514 = vmatpush1.msra.mxu0 0.0
    %1515 = vmatprep.subr.mxu0 0.0
    %1516 = vmatpush1.msra.mxu0 0.0
    %1517 = vmatprep.subr.mxu0 0.0
    %1518 = vmatpush1.msra.mxu0 0.0
    %1519 = vmatprep.subr.mxu0 0.0
    %1520 = vmatpush1.msra.mxu0 0.0
    %1521 = vmatprep.subr.mxu0 0.0
    %1522 = vmatpush1.msra.mxu0 0.0
    %1523 = vmatprep.subr.mxu0 0.0
    %1524 = vmatpush1.msra.mxu0 %v1498
    %1525 = vmatprep.subr.mxu0 0.0
    %1526 = vmatpush1.msra.mxu0 %v1497
    %1527 = vmatprep.subr.mxu0 0.0
    %1528 = vmatpush1.msra.mxu0 %v1496
    %1529 = vmatprep.subr.mxu0 0.0
    %1530 = vmatpush1.msra.mxu0 %v1495
    %1531 = vmatprep.subr.mxu0 0.0
    %1532 = vmatpush1.msra.mxu0 %v1494
    %1533 = vmatprep.subr.mxu0 0.0
    %1534 = vmatpush1.msra.mxu0 %v1493
    %1535 = vmatprep.subr.mxu0 0.0
    %1536 = vmatpush1.msra.mxu0 %v1492
    %1537 = vmatprep.subr.mxu0 0.0
    %1538 = vmatpush1.msra.mxu0 %v1491
    %1539 = vmatprep.subr.mxu0 0.0
    %1540 = vmatpush2.msra.mxu0 0.0
    %1541 = vmatprep.subr.mxu0 0.0
    %1542 = vmatpush2.msra.mxu0 0.0
    %1543 = vmatprep.subr.mxu0 0.0
    %1544 = vmatpush2.msra.mxu0 0.0
    %1545 = vmatprep.subr.mxu0 0.0
    %1546 = vmatpush2.msra.mxu0 0.0
    %1547 = vmatprep.subr.mxu0 0.0
    %1548 = vmatpush2.msra.mxu0 0.0
    %1549 = vmatprep.subr.mxu0 0.0
    %1550 = vmatpush2.msra.mxu0 0.0
    %1551 = vmatprep.subr.mxu0 0.0
    %1552 = vmatpush2.msra.mxu0 0.0
    %1553 = vmatprep.subr.mxu0 0.0
    %1554 = vmatpush2.msra.mxu0 0.0
    %1555 = vmatprep.subr.mxu0 0.0
    %1556 = vmatpush2.msra.mxu0 0.0
    %1557 = vmatprep.subr.mxu0 0.0
    %1558 = vmatpush2.msra.mxu0 0.0
    %1559 = vmatprep.subr.mxu0 0.0
    %1560 = vmatpush2.msra.mxu0 0.0
    %1561 = vmatprep.subr.mxu0 0.0
    %1562 = vmatpush2.msra.mxu0 0.0
    %1563 = vmatprep.subr.mxu0 0.0
    %1564 = vmatpush2.msra.mxu0 0.0
    %1565 = vmatprep.subr.mxu0 0.0
    %1566 = vmatpush2.msra.mxu0 0.0
    %1567 = vmatprep.subr.mxu0 0.0
    %1568 = vmatpush2.msra.mxu0 0.0
    %1569 = vmatprep.subr.mxu0 0.0
    %1570 = vmatpush2.msra.mxu0 0.0
    %1571 = vmatprep.mubr.f32.mxu0 0.0
    %1572 = vmatmul.mubr.f32.gmra.mxu0 %v1505
    %v1573 = vpop.f32.mrf.mxu0
    %v1574 = vadd.f32 %v1503, %v1573
    %v1575 = vpop.f32.mrf.mxu0
    %1576 = vdwg.mxu0
    %v1577 = vmax.f32 %v1574, 0.0
    %s1578 = scalar_lea.vmem [#allocation5], 128
    %v1579 = vld [vmem:[%s1578] sm:$0xff]
    %v1580 = vld [vmem:[%s1578 + $0x8] sm:$0xff]
    %v1581 = vld [vmem:[%s1578 + $0x10] sm:$0xff]
    %v1582 = vld [vmem:[%s1578 + $0x18] sm:$0xff]
    %v1583 = vld [vmem:[%s1578 + $0x20] sm:$0xff]
    %v1584 = vld [vmem:[%s1578 + $0x28] sm:$0xff]
    %v1585 = vld [vmem:[%s1578 + $0x30] sm:$0xff]
    %v1586 = vld [vmem:[%s1578 + $0x38] sm:$0xff]
    %v1587 = vld [vmem:[#allocation7 + $0x5] sm:$0x1]
    %v1588 = vlaneseq
    %v1589 = vshrl.u32 %v1588, 7
    %v1590 = vsub.s32 0, %v1589
    %v1591 = vrot.slane %v1587, %v1590
    %v1593 = vsel %vm1416, %v1577, 0
    %1595 = vmatprep.subr.mxu0 0.0
    %1596 = vmatpush1.msra.mxu0 0.0
    %1597 = vmatprep.subr.mxu0 0.0
    %1598 = vmatpush1.msra.mxu0 0.0
    %1599 = vmatprep.subr.mxu0 0.0
    %1600 = vmatpush1.msra.mxu0 0.0
    %1601 = vmatprep.subr.mxu0 0.0
    %1602 = vmatpush1.msra.mxu0 0.0
    %1603 = vmatprep.subr.mxu0 0.0
    %1604 = vmatpush1.msra.mxu0 0.0
    %1605 = vmatprep.subr.mxu0 0.0
    %1606 = vmatpush1.msra.mxu0 0.0
    %1607 = vmatprep.subr.mxu0 0.0
    %1608 = vmatpush1.msra.mxu0 0.0
    %1609 = vmatprep.subr.mxu0 0.0
    %1610 = vmatpush1.msra.mxu0 0.0
    %1611 = vmatprep.subr.mxu0 0.0
    %1612 = vmatpush1.msra.mxu0 %v1586
    %1613 = vmatprep.subr.mxu0 0.0
    %1614 = vmatpush1.msra.mxu0 %v1585
    %1615 = vmatprep.subr.mxu0 0.0
    %1616 = vmatpush1.msra.mxu0 %v1584
    %1617 = vmatprep.subr.mxu0 0.0
    %1618 = vmatpush1.msra.mxu0 %v1583
    %1619 = vmatprep.subr.mxu0 0.0
    %1620 = vmatpush1.msra.mxu0 %v1582
    %1621 = vmatprep.subr.mxu0 0.0
    %1622 = vmatpush1.msra.mxu0 %v1581
    %1623 = vmatprep.subr.mxu0 0.0
    %1624 = vmatpush1.msra.mxu0 %v1580
    %1625 = vmatprep.subr.mxu0 0.0
    %1626 = vmatpush1.msra.mxu0 %v1579
    %1627 = vmatprep.subr.mxu0 0.0
    %1628 = vmatpush2.msra.mxu0 0.0
    %1629 = vmatprep.subr.mxu0 0.0
    %1630 = vmatpush2.msra.mxu0 0.0
    %1631 = vmatprep.subr.mxu0 0.0
    %1632 = vmatpush2.msra.mxu0 0.0
    %1633 = vmatprep.subr.mxu0 0.0
    %1634 = vmatpush2.msra.mxu0 0.0
    %1635 = vmatprep.subr.mxu0 0.0
    %1636 = vmatpush2.msra.mxu0 0.0
    %1637 = vmatprep.subr.mxu0 0.0
    %1638 = vmatpush2.msra.mxu0 0.0
    %1639 = vmatprep.subr.mxu0 0.0
    %1640 = vmatpush2.msra.mxu0 0.0
    %1641 = vmatprep.subr.mxu0 0.0
    %1642 = vmatpush2.msra.mxu0 0.0
    %1643 = vmatprep.subr.mxu0 0.0
    %1644 = vmatpush2.msra.mxu0 0.0
    %1645 = vmatprep.subr.mxu0 0.0
    %1646 = vmatpush2.msra.mxu0 0.0
    %1647 = vmatprep.subr.mxu0 0.0
    %1648 = vmatpush2.msra.mxu0 0.0
    %1649 = vmatprep.subr.mxu0 0.0
    %1650 = vmatpush2.msra.mxu0 0.0
    %1651 = vmatprep.subr.mxu0 0.0
    %1652 = vmatpush2.msra.mxu0 0.0
    %1653 = vmatprep.subr.mxu0 0.0
    %1654 = vmatpush2.msra.mxu0 0.0
    %1655 = vmatprep.subr.mxu0 0.0
    %1656 = vmatpush2.msra.mxu0 0.0
    %1657 = vmatprep.subr.mxu0 0.0
    %1658 = vmatpush2.msra.mxu0 0.0
    %1659 = vmatprep.mubr.f32.mxu0 0.0
    %1660 = vmatmul.mubr.f32.gmra.mxu0 %v1593
    %v1661 = vpop.f32.mrf.mxu0
    %v1662 = vadd.f32 %v1591, %v1661
    %v1663 = vpop.f32.mrf.mxu0
    %1664 = vdwg.mxu0
    %1665 = vst.msk [vmem:[#allocation8] sm:$0xf] %vm678, %v1662
    // Predicated region
    $region26: #{graphnet_forward.1} parent=1 // pred_check
      _
    $region27: #{graphnet_forward.1} parent=1 // pred_check_branch
      %1667 = sbr.rel (0) target = $region29
    $region28: #{graphnet_forward.1} parent=1 // pred_region
      %s1669 = ssub.s32 64, 64
      %1670 = vsyncadd [#allocation4], %s1669
      %s1672 = sshll.u32 [#allocation8], 4
      %s1673 = int_to_ptr.vmem [resolvable:$true] %s1672
      %1675 = dma.vmem_to_hbm [thread:$0]  %s1673, 64, %s3, [#allocation4]
    $region29: #{graphnet_forward.1} parent=1 // pred_fallthru
      _
    // Predicated region
    $region30: #{graphnet_forward.1} parent=1 // pred_check
      _
    $region31: #{graphnet_forward.1} parent=1 // pred_check_branch
      %1677 = sbr.rel (0) target = $region33
    $region32: #{graphnet_forward.1} parent=1 // pred_region
      %1678 = dma.done [#allocation4], 64
    $region33: #{graphnet_forward.1} parent=1 // pred_fallthru
      _
    %1679 = vsyncpa [#allocation3], 1
    %1680 = vsyncpa [#allocation6], 1
    %1681 = vsyncpa [#allocation4], 1

</llo_original>
